<compile_context>
chip_gen: v6e
topology: v6e:2x2x1
jax: 0.10.0
libtpu: 0.0.40
codegen_flags: <defaults>
</compile_context>

<pallas_src>
import jax
import jax.numpy as jnp
from jax.experimental import pallas as pl
from jax.experimental.pallas import tpu as pltpu

MAX_ITER = 10
EPSILON = 1e-4


def _sinkhorn_kernel(s_ref, o_ref):
    # s_ref / o_ref blocks: (TB, N, M).  K stays read-only; only the 1-D
    # scaling vectors u (rows) and v (cols) are updated each iteration.
    k = s_ref[...].astype(jnp.float32) + EPSILON

    u = None  # (TB, N, 1) row scales; None == all-ones
    v = None  # (TB, 1, M) col scales; None == all-ones
    for i in range(MAX_ITER):  # static Python constant -> unrolled
        if i % 2 == 1:
            # row-normalize: u_r = 1 / sum_c (K_rc * v_c)
            kv = k if v is None else k * v
            u = pl.reciprocal(jnp.sum(kv, axis=2, keepdims=True), approx=False)
        else:
            # col-normalize: v_c = 1 / sum_r (u_r * K_rc)
            ku = k if u is None else k * u
            v = pl.reciprocal(jnp.sum(ku, axis=1, keepdims=True), approx=False)

    out = k
    if u is not None:
        out = out * u
    if v is not None:
        out = out * v
    o_ref[...] = out.astype(o_ref.dtype)


def _choose_tb(B, N, M):
    """Batch matrices per grid step: ~2 MiB f32 blocks, >=2 grid steps if we can."""
    target_elems = (2 << 20) // 4
    tb = max(1, min(B, target_elems // max(1, N * M)))
    if B >= 2:
        tb = min(tb, max(1, B // 2))  # keep both v7x TensorCores busy
    while B % tb:                     # make TB divide B (no padded blocks)
        tb -= 1
    return tb


def sinkhorn(s, donate=False):
    """s: [B, N, N] -> bi-stochastic(ish) [B, N, N] float32."""
    # TODO(synk): skaddcr / dummy_row / per-batch nrows,ncols / exp branches of
    # the PyTorch module are not exercised by its defaults and not implemented.
    B, N, M = s.shape
    s = s.astype(jnp.float32)
    tb = _choose_tb(B, N, M)
    grid = (B // tb,)

    block_bytes = tb * N * M * 4
    # ~2 in + 2 out pipeline buffers + temporaries; clamp to a v7x-safe budget.
    vmem_limit = int(min(48 << 20, max(16 << 20, 8 * block_bytes)))

    extra = {"input_output_aliases": {0: 0}} if donate else {}

    return pl.pallas_call(
        _sinkhorn_kernel,
        out_shape=jax.ShapeDtypeStruct((B, N, M), jnp.float32),
        grid_spec=pltpu.PrefetchScalarGridSpec(
            num_scalar_prefetch=0,
            grid=grid,
            in_specs=[pl.BlockSpec((tb, N, M), lambda b: (b, 0, 0))],
            out_specs=pl.BlockSpec((tb, N, M), lambda b: (b, 0, 0)),
        ),
        compiler_params=pltpu.CompilerParams(
            dimension_semantics=("parallel",),
            vmem_limit_bytes=vmem_limit,
        ),
        **extra,
    )(s)


def sinkhorn_ref(s):
    """Pure-JAX reference mirroring the PyTorch forward (default args)."""
    s = s.astype(jnp.float32) + EPSILON
    for i in range(MAX_ITER):
        if i % 2 == 1:
            ssum = jnp.sum(s, axis=2, keepdims=True)
        else:
            ssum = jnp.sum(s, axis=1, keepdims=True)
        s = s * (1.0 / ssum)
    return s


if __name__ == "__main__":
    key = jax.random.PRNGKey(0)
    k1, k2 = jax.random.split(key)

    # Case 1: lane-dense matrices (N = 128); TB=4 matrices per grid step.
    B1, N1 = 8, 128
    s1 = jax.random.uniform(k1, (B1, N1, N1), dtype=jnp.float32)
    out1 = jax.block_until_ready(sinkhorn(s1))
    ref1 = sinkhorn_ref(s1)
    assert out1.shape == (B1, N1, N1)
    assert jnp.allclose(out1, ref1, atol=1e-5, rtol=1e-5), (
        f"max abs err = {float(jnp.max(jnp.abs(out1 - ref1)))}")

    # Case 2: tiny matrices (N = 16) — exercises the general / small-N path.
    B2, N2 = 2, 16
    s2 = jax.random.uniform(k2, (B2, N2, N2), dtype=jnp.float32)
    out2 = jax.block_until_ready(sinkhorn(s2))
    ref2 = sinkhorn_ref(s2)
    assert jnp.allclose(out2, ref2, atol=1e-5, rtol=1e-5), (
        f"max abs err = {float(jnp.max(jnp.abs(out2 - ref2)))}")

    # Case 3: donating (input/output aliased) variant under jit.
    out3 = jax.block_until_ready(jax.jit(lambda x: sinkhorn(x, donate=True))(s1))
    assert jnp.allclose(out3, ref1, atol=1e-5, rtol=1e-5), (
        f"max abs err = {float(jnp.max(jnp.abs(out3 - ref1)))}")

    print("KERNEL_OK")
</pallas_src>

<mosaic_0001>
module attributes {stable_mosaic.version = 11 : i64} {
  func.func @_sinkhorn_kernel(%arg0: i32, %arg1: memref<4x128x128xf32, #tpu.memory_space<vmem>>, %arg2: memref<4x128x128xf32, #tpu.memory_space<vmem>>) attributes {dimension_semantics = [#tpu.dimension_semantics<parallel>], iteration_bounds = array<i64: 2>, scalar_prefetch = 0 : i64, scratch_operands = 0 : i64, tpu.core_type = #tpu.core_type<tc>, window_params = [{transform_indices = @transform_0, window_bounds = array<i64: 4, 128, 128>}, {transform_indices = @transform_1, window_bounds = array<i64: 4, 128, 128>}]} {
    %c0 = arith.constant 0 : index
    %c0_0 = arith.constant 0 : index
    %c0_1 = arith.constant 0 : index
    %0 = vector.load %arg1[%c0, %c0_0, %c0_1] : memref<4x128x128xf32, #tpu.memory_space<vmem>>, vector<4x128x128xf32>
    %cst = arith.constant 9.99999974E-5 : f32
    %1 = vector.broadcast %cst : f32 to vector<4x128x128xf32>
    %2 = arith.addf %0, %1 : vector<4x128x128xf32>
    %cst_2 = arith.constant dense<0.000000e+00> : vector<4x128xf32>
    %3 = vector.multi_reduction <add>, %2, %cst_2 [1] : vector<4x128x128xf32> to vector<4x128xf32>
    %4 = vector.shape_cast %3 : vector<4x128xf32> to vector<4x1x128xf32>
    %5 = tpu.reciprocal %4 : vector<4x1x128xf32> -> vector<4x1x128xf32>
    %6 = vector.broadcast %5 : vector<4x1x128xf32> to vector<4x128x128xf32>
    %7 = arith.mulf %2, %6 : vector<4x128x128xf32>
    %cst_3 = arith.constant dense<0.000000e+00> : vector<4x128xf32>
    %8 = vector.multi_reduction <add>, %7, %cst_3 [2] : vector<4x128x128xf32> to vector<4x128xf32>
    %9 = vector.shape_cast %8 : vector<4x128xf32> to vector<4x128x1xf32>
    %10 = tpu.reciprocal %9 : vector<4x128x1xf32> -> vector<4x128x1xf32>
    %11 = vector.broadcast %10 : vector<4x128x1xf32> to vector<4x128x128xf32>
    %12 = arith.mulf %2, %11 : vector<4x128x128xf32>
    %cst_4 = arith.constant dense<0.000000e+00> : vector<4x128xf32>
    %13 = vector.multi_reduction <add>, %12, %cst_4 [1] : vector<4x128x128xf32> to vector<4x128xf32>
    %14 = vector.shape_cast %13 : vector<4x128xf32> to vector<4x1x128xf32>
    %15 = tpu.reciprocal %14 : vector<4x1x128xf32> -> vector<4x1x128xf32>
    %16 = vector.broadcast %15 : vector<4x1x128xf32> to vector<4x128x128xf32>
    %17 = arith.mulf %2, %16 : vector<4x128x128xf32>
    %cst_5 = arith.constant dense<0.000000e+00> : vector<4x128xf32>
    %18 = vector.multi_reduction <add>, %17, %cst_5 [2] : vector<4x128x128xf32> to vector<4x128xf32>
    %19 = vector.shape_cast %18 : vector<4x128xf32> to vector<4x128x1xf32>
    %20 = tpu.reciprocal %19 : vector<4x128x1xf32> -> vector<4x128x1xf32>
    %21 = vector.broadcast %20 : vector<4x128x1xf32> to vector<4x128x128xf32>
    %22 = arith.mulf %2, %21 : vector<4x128x128xf32>
    %cst_6 = arith.constant dense<0.000000e+00> : vector<4x128xf32>
    %23 = vector.multi_reduction <add>, %22, %cst_6 [1] : vector<4x128x128xf32> to vector<4x128xf32>
    %24 = vector.shape_cast %23 : vector<4x128xf32> to vector<4x1x128xf32>
    %25 = tpu.reciprocal %24 : vector<4x1x128xf32> -> vector<4x1x128xf32>
    %26 = vector.broadcast %25 : vector<4x1x128xf32> to vector<4x128x128xf32>
    %27 = arith.mulf %2, %26 : vector<4x128x128xf32>
    %cst_7 = arith.constant dense<0.000000e+00> : vector<4x128xf32>
    %28 = vector.multi_reduction <add>, %27, %cst_7 [2] : vector<4x128x128xf32> to vector<4x128xf32>
    %29 = vector.shape_cast %28 : vector<4x128xf32> to vector<4x128x1xf32>
    %30 = tpu.reciprocal %29 : vector<4x128x1xf32> -> vector<4x128x1xf32>
    %31 = vector.broadcast %30 : vector<4x128x1xf32> to vector<4x128x128xf32>
    %32 = arith.mulf %2, %31 : vector<4x128x128xf32>
    %cst_8 = arith.constant dense<0.000000e+00> : vector<4x128xf32>
    %33 = vector.multi_reduction <add>, %32, %cst_8 [1] : vector<4x128x128xf32> to vector<4x128xf32>
    %34 = vector.shape_cast %33 : vector<4x128xf32> to vector<4x1x128xf32>
    %35 = tpu.reciprocal %34 : vector<4x1x128xf32> -> vector<4x1x128xf32>
    %36 = vector.broadcast %35 : vector<4x1x128xf32> to vector<4x128x128xf32>
    %37 = arith.mulf %2, %36 : vector<4x128x128xf32>
    %cst_9 = arith.constant dense<0.000000e+00> : vector<4x128xf32>
    %38 = vector.multi_reduction <add>, %37, %cst_9 [2] : vector<4x128x128xf32> to vector<4x128xf32>
    %39 = vector.shape_cast %38 : vector<4x128xf32> to vector<4x128x1xf32>
    %40 = tpu.reciprocal %39 : vector<4x128x1xf32> -> vector<4x128x1xf32>
    %41 = vector.broadcast %40 : vector<4x128x1xf32> to vector<4x128x128xf32>
    %42 = arith.mulf %2, %41 : vector<4x128x128xf32>
    %cst_10 = arith.constant dense<0.000000e+00> : vector<4x128xf32>
    %43 = vector.multi_reduction <add>, %42, %cst_10 [1] : vector<4x128x128xf32> to vector<4x128xf32>
    %44 = vector.shape_cast %43 : vector<4x128xf32> to vector<4x1x128xf32>
    %45 = tpu.reciprocal %44 : vector<4x1x128xf32> -> vector<4x1x128xf32>
    %46 = vector.broadcast %45 : vector<4x1x128xf32> to vector<4x128x128xf32>
    %47 = arith.mulf %2, %46 : vector<4x128x128xf32>
    %cst_11 = arith.constant dense<0.000000e+00> : vector<4x128xf32>
    %48 = vector.multi_reduction <add>, %47, %cst_11 [2] : vector<4x128x128xf32> to vector<4x128xf32>
    %49 = vector.shape_cast %48 : vector<4x128xf32> to vector<4x128x1xf32>
    %50 = tpu.reciprocal %49 : vector<4x128x1xf32> -> vector<4x128x1xf32>
    %51 = vector.broadcast %50 : vector<4x128x1xf32> to vector<4x128x128xf32>
    %52 = arith.mulf %2, %51 : vector<4x128x128xf32>
    %53 = vector.broadcast %45 : vector<4x1x128xf32> to vector<4x128x128xf32>
    %54 = arith.mulf %52, %53 : vector<4x128x128xf32>
    %c0_12 = arith.constant 0 : index
    %c0_13 = arith.constant 0 : index
    %c0_14 = arith.constant 0 : index
    %55 = vector.load %arg2[%c0_12, %c0_13, %c0_14] : memref<4x128x128xf32, #tpu.memory_space<vmem>>, vector<4x128x128xf32>
    tpu.vector_store %arg2[%c0_12, %c0_13, %c0_14], %54 {strides = array<i32>} : memref<4x128x128xf32, #tpu.memory_space<vmem>>, vector<4x128x128xf32>,
    return
  }
  func.func @transform_0(%arg0: i32) -> (i32, i32, i32) {
    %c0_i32 = arith.constant 0 : i32
    %c0_i32_0 = arith.constant 0 : i32
    %c0_i32_1 = arith.constant 0 : i32
    return %arg0, %c0_i32, %c0_i32_0 : i32, i32, i32
  }
  func.func @transform_1(%arg0: i32) -> (i32, i32, i32) {
    %c0_i32 = arith.constant 0 : i32
    %c0_i32_0 = arith.constant 0 : i32
    %c0_i32_1 = arith.constant 0 : i32
    return %arg0, %c0_i32, %c0_i32_0 : i32, i32, i32
  }
}

</mosaic_0001>

<llo_original>
// kernel: tpu_custom_call.1
$region0: #{tpu_custom_call.1}
  #allocation0 [shape = 'u32[]', space=smem, size = 0x4, offset = 0x4, fixed_abs, tag = 'smem constant byte address 0x4 - core index']
  #allocation1 [shape = 'u32[144,128]{1,0:T(1,128)}', space=vmem, size = 0x12000, scoped, tag = 'internal scratch']
  %s0 = inlined_call_operand.hbm [shape: f32[8,128,128], index: 0, kind: input, shape index: {}]
  %s1 = inlined_call_operand.hbm [shape: f32[8,128,128], index: 1, kind: output, shape index: {}]
  %s2 = sld [smem:[#allocation0]]
  $region41: #{tpu_custom_call.1} parent=0
    _
  %s4 = ssub.s32 1, %s2
  %s5 = scalar_select 0, %s4, %s2
  $region1: #{tpu_custom_call.1} parent=0
    #allocation2 [shape = 'u8[524288]{0}', space=vmem, size = 0x80000, scoped, tag = 'input window, operand 0']
    #allocation3 [shape = 's32[2]{0}', space=sflag, size = 0x8, scoped, tag = 'scoped memory for tpu_custom_call.1']
    #allocation4 [shape = 's32[2]{0}', space=sflag, size = 0x8, scoped, tag = 'scoped memory for tpu_custom_call.1']
    #allocation5 [shape = 'u8[524288]{0}', space=vmem, size = 0x80000, scoped, tag = 'output window, operand 0']
    %6 = vsyncpa [#allocation3], 0
    %s7 = scalar_lea.sflag [#allocation3], 1
    %8 = vsyncpa %s7, 0
    %9 = vsyncpa [#allocation4], 0
    %s10 = scalar_lea.sflag [#allocation4], 1
    %11 = vsyncpa %s10, 0
    loop: start=0, step=1, limit=4
    $region2: #{tpu_custom_call.1} parent=1 // loop_pre_header
      _
    $region3: #{tpu_custom_call.1} parent=1 // loop_header
      %s13 = sphi 0, %s17
      %p14 = scmp.ge.s32.totalorder %s13, 4
      %s23 = sphi 0, %s25
      %s26 = sphi 0, %s23
      %s27 = sphi 0, %s26
      %s43 = sphi 0, %s27
      %s49 = sphi 0, %s51
      %s52 = sphi 0, %s49
      %s53 = sphi 0, %s52
      %s69 = sphi 0, %s53
    $region4: #{tpu_custom_call.1} parent=1 // loop_header_branch
      %16 = sbr.rel (%p14) target = $region8
    $region5: #{tpu_custom_call.1} parent=1 // loop_body
      %s18 = ssub.s32 %s13, 1
      %s19 = ssub.s32 %s13, 2
      %s20 = sadd.s32 %s13, 1
      %s21 = ssub.s32 %s13, %s20
      %p22 = scmp.eq.s32.totalorder %s21, 0
      %s24 = sadd.s32 %s23, 1
      %s25 = scalar_select %p22, %s23, %s24
      %p28 = pneg %p22
      %p29 = scmp.eq.s32.totalorder %s13, 1
      %p30 = por %p28, %p29
      %p31 = scmp.ne.s32.totalorder %s23, %s26
      %p32 = scmp.eq.s32.totalorder %s13, 0
      %p33 = por %p31, %p32
      %p34 = scmp.ne.s32.totalorder %s23, %s26
      %p35 = scmp.eq.s32.totalorder %s18, 1
      %p36 = por %p34, %p35
      %p37 = scmp.ne.s32.totalorder %s26, %s27
      %p38 = scmp.eq.s32.totalorder %s18, 0
      %p39 = por %p37, %p38
      %p40 = scmp.ne.s32.totalorder %s26, %s27
      %p41 = scmp.eq.s32.totalorder %s19, 1
      %p42 = por %p40, %p41
      %p44 = scmp.ne.s32.totalorder %s27, %s43
      %p45 = scmp.eq.s32.totalorder %s19, 0
      %p46 = por %p44, %p45
      %s47 = ssub.s32 %s13, %s20
      %p48 = scmp.eq.s32.totalorder %s47, 0
      %s50 = sadd.s32 %s49, 1
      %s51 = scalar_select %p48, %s49, %s50
      %p54 = pneg %p48
      %p55 = scmp.eq.s32.totalorder %s13, 1
      %p56 = por %p54, %p55
      %p57 = scmp.ne.s32.totalorder %s49, %s52
      %p58 = scmp.eq.s32.totalorder %s13, 0
      %p59 = por %p57, %p58
      %p60 = scmp.ne.s32.totalorder %s49, %s52
      %p61 = scmp.eq.s32.totalorder %s18, 1
      %p62 = por %p60, %p61
      %p63 = scmp.ne.s32.totalorder %s52, %s53
      %p64 = scmp.eq.s32.totalorder %s18, 0
      %p65 = por %p63, %p64
      %p66 = scmp.ne.s32.totalorder %s52, %s53
      %p67 = scmp.eq.s32.totalorder %s19, 1
      %p68 = por %p66, %p67
      %p70 = scmp.ne.s32.totalorder %s53, %s69
      %p71 = scmp.eq.s32.totalorder %s19, 0
      %p72 = por %p70, %p71
      %p73 = scmp.le.s32.totalorder 1, %s13
      %p74 = scmp.lt.s32.totalorder %s13, 3
      %p75 = pnand %p73, %p74
      %p76 = pneg %p75
      // Predicated region
      $region9: #{tpu_custom_call.1} parent=5 // pred_check
        _
      $region10: #{tpu_custom_call.1} parent=5 // pred_check_branch
        %78 = sbr.rel (%p75) target = $region12
      $region11: #{tpu_custom_call.1} parent=5 // pred_region
        %s79 = ssub.s32 %s13, 1
      $region12: #{tpu_custom_call.1} parent=5 // pred_fallthru
        _
      %p80 = scmp.lt.s32.totalorder %s13, 2
      // Predicated region
      $region13: #{tpu_custom_call.1} parent=5 // pred_check
        %p81 = pneg %p80
      $region14: #{tpu_custom_call.1} parent=5 // pred_check_branch
        %83 = sbr.rel (%p81) target = $region16
      $region15: #{tpu_custom_call.1} parent=5 // pred_region
        // Predicated region
        $region17: #{tpu_custom_call.1} parent=15 // pred_check
          %p84 = pneg %p33
        $region18: #{tpu_custom_call.1} parent=15 // pred_check_branch
          %86 = sbr.rel (%p84) target = $region20
        $region19: #{tpu_custom_call.1} parent=15 // pred_region
          %s87 = sand.u32 %s23, 1
          %s88 = scalar_lea.sflag [#allocation3], %s87
          %s89 = sand.u32 %s23, 1
          %s90 = smul.addr %s89, 512
          %s91 = scalar_lea.vmem [#allocation2], %s90
          %s92 = smul.u32 4, %s13
          %s94 = ssub.s32 8192, 8192
          %95 = vsyncadd %s88, %s94
          %s96 = smul.addr %s92, 16
          %s97 = smul.addr %s96, 128
          %s98 = scalar_lea.hbm %s0, %s97
          %s99 = sshll.u32 %s91, 4
          %s100 = int_to_ptr.vmem [resolvable:$true] %s99
          %105 = dma.hbm_to_vmem [thread:$0]  %s98, 8192, %s100, %s88, 128, 128, 8
        $region20: #{tpu_custom_call.1} parent=15 // pred_fallthru
          _
      $region16: #{tpu_custom_call.1} parent=5 // pred_fallthru
        _
      %p106 = scmp.le.s32.totalorder 1, %s13
      %p107 = scmp.lt.s32.totalorder %s13, 3
      %p108 = pnand %p106, %p107
      %p109 = pneg %p108
      // Predicated region
      $region21: #{tpu_custom_call.1} parent=5 // pred_check
        _
      $region22: #{tpu_custom_call.1} parent=5 // pred_check_branch
        %111 = sbr.rel (%p108) target = $region24
      $region23: #{tpu_custom_call.1} parent=5 // pred_region
        %s112 = ssub.s32 %s13, 1
        %s113 = sand.u32 %s26, 1
        %s114 = scalar_lea.sflag [#allocation3], %s113
        %s115 = sand.u32 %s26, 1
        %s116 = smul.addr %s115, 512
        %s117 = scalar_lea.vmem [#allocation2], %s116
        // Predicated region
        $region25: #{tpu_custom_call.1} parent=23 // pred_check
          %p118 = pneg %p39
        $region26: #{tpu_custom_call.1} parent=23 // pred_check_branch
          %120 = sbr.rel (%p118) target = $region28
        $region27: #{tpu_custom_call.1} parent=23 // pred_region
          %121 = dma.done %s114, 8192
        $region28: #{tpu_custom_call.1} parent=23 // pred_fallthru
          _
        %s122 = sand.u32 %s26, 1
        %s123 = scalar_lea.sflag [#allocation3], %s122
        %s124 = sand.u32 %s26, 1
        %s125 = smul.addr %s124, 512
        %s126 = scalar_lea.vmem [#allocation2], %s125
        %p127 = pneg %p39
        %p128 = pneg %p36
        %p129 = pneg %p65
        %p130 = pneg %p62
        %s131 = sand.u32 %s52, 1
        %s132 = scalar_lea.sflag [#allocation4], %s131
        %s133 = sand.u32 %s52, 1
        %s134 = smul.addr %s133, 512
        %s135 = scalar_lea.vmem [#allocation5], %s134
        %s136 = smul.u32 4, %s18
        %s137 = smul.u32 4, %s18
        %v138 = vld [vmem:[%s117] sm:$0xff]
        %v139 = vld [vmem:[%s117 + $0x8] sm:$0xff]
        %v140 = vld [vmem:[%s117 + $0x10] sm:$0xff]
        %v141 = vld [vmem:[%s117 + $0x18] sm:$0xff]
        %v142 = vld [vmem:[%s117 + $0x20] sm:$0xff]
        %v143 = vld [vmem:[%s117 + $0x28] sm:$0xff]
        %v144 = vld [vmem:[%s117 + $0x30] sm:$0xff]
        %v145 = vld [vmem:[%s117 + $0x38] sm:$0xff]
        %v146 = vld [vmem:[%s117 + $0x40] sm:$0xff]
        %v147 = vld [vmem:[%s117 + $0x48] sm:$0xff]
        %v148 = vld [vmem:[%s117 + $0x50] sm:$0xff]
        %v149 = vld [vmem:[%s117 + $0x58] sm:$0xff]
        %v150 = vld [vmem:[%s117 + $0x60] sm:$0xff]
        %v151 = vld [vmem:[%s117 + $0x68] sm:$0xff]
        %v152 = vld [vmem:[%s117 + $0x70] sm:$0xff]
        %v153 = vld [vmem:[%s117 + $0x78] sm:$0xff]
        %v154 = vld [vmem:[%s117 + $0x80] sm:$0xff]
        %v155 = vld [vmem:[%s117 + $0x88] sm:$0xff]
        %v156 = vld [vmem:[%s117 + $0x90] sm:$0xff]
        %v157 = vld [vmem:[%s117 + $0x98] sm:$0xff]
        %v158 = vld [vmem:[%s117 + $0xa0] sm:$0xff]
        %v159 = vld [vmem:[%s117 + $0xa8] sm:$0xff]
        %v160 = vld [vmem:[%s117 + $0xb0] sm:$0xff]
        %v161 = vld [vmem:[%s117 + $0xb8] sm:$0xff]
        %v162 = vld [vmem:[%s117 + $0xc0] sm:$0xff]
        %v163 = vld [vmem:[%s117 + $0xc8] sm:$0xff]
        %v164 = vld [vmem:[%s117 + $0xd0] sm:$0xff]
        %v165 = vld [vmem:[%s117 + $0xd8] sm:$0xff]
        %v166 = vld [vmem:[%s117 + $0xe0] sm:$0xff]
        %v167 = vld [vmem:[%s117 + $0xe8] sm:$0xff]
        %v168 = vld [vmem:[%s117 + $0xf0] sm:$0xff]
        %v169 = vld [vmem:[%s117 + $0xf8] sm:$0xff]
        %v170 = vld [vmem:[%s117 + $0x100] sm:$0xff]
        %v171 = vld [vmem:[%s117 + $0x108] sm:$0xff]
        %v172 = vld [vmem:[%s117 + $0x110] sm:$0xff]
        %v173 = vld [vmem:[%s117 + $0x118] sm:$0xff]
        %v174 = vld [vmem:[%s117 + $0x120] sm:$0xff]
        %v175 = vld [vmem:[%s117 + $0x128] sm:$0xff]
        %v176 = vld [vmem:[%s117 + $0x130] sm:$0xff]
        %v177 = vld [vmem:[%s117 + $0x138] sm:$0xff]
        %v178 = vld [vmem:[%s117 + $0x140] sm:$0xff]
        %v179 = vld [vmem:[%s117 + $0x148] sm:$0xff]
        %v180 = vld [vmem:[%s117 + $0x150] sm:$0xff]
        %v181 = vld [vmem:[%s117 + $0x158] sm:$0xff]
        %v182 = vld [vmem:[%s117 + $0x160] sm:$0xff]
        %v183 = vld [vmem:[%s117 + $0x168] sm:$0xff]
        %v184 = vld [vmem:[%s117 + $0x170] sm:$0xff]
        %v185 = vld [vmem:[%s117 + $0x178] sm:$0xff]
        %v186 = vld [vmem:[%s117 + $0x180] sm:$0xff]
        %v187 = vld [vmem:[%s117 + $0x188] sm:$0xff]
        %v188 = vld [vmem:[%s117 + $0x190] sm:$0xff]
        %v189 = vld [vmem:[%s117 + $0x198] sm:$0xff]
        %v190 = vld [vmem:[%s117 + $0x1a0] sm:$0xff]
        %v191 = vld [vmem:[%s117 + $0x1a8] sm:$0xff]
        %v192 = vld [vmem:[%s117 + $0x1b0] sm:$0xff]
        %v193 = vld [vmem:[%s117 + $0x1b8] sm:$0xff]
        %v194 = vld [vmem:[%s117 + $0x1c0] sm:$0xff]
        %v195 = vld [vmem:[%s117 + $0x1c8] sm:$0xff]
        %v196 = vld [vmem:[%s117 + $0x1d0] sm:$0xff]
        %v197 = vld [vmem:[%s117 + $0x1d8] sm:$0xff]
        %v198 = vld [vmem:[%s117 + $0x1e0] sm:$0xff]
        %v199 = vld [vmem:[%s117 + $0x1e8] sm:$0xff]
        %v200 = vld [vmem:[%s117 + $0x1f0] sm:$0xff]
        %v201 = vld [vmem:[%s117 + $0x1f8] sm:$0xff]
        %v202 = vadd.f32 %v138, 0.0001
        %v203 = vadd.f32 %v139, 0.0001
        %v204 = vadd.f32 %v140, 0.0001
        %v205 = vadd.f32 %v141, 0.0001
        %v206 = vadd.f32 %v142, 0.0001
        %v207 = vadd.f32 %v143, 0.0001
        %v208 = vadd.f32 %v144, 0.0001
        %v209 = vadd.f32 %v145, 0.0001
        %v210 = vadd.f32 %v146, 0.0001
        %v211 = vadd.f32 %v147, 0.0001
        %v212 = vadd.f32 %v148, 0.0001
        %v213 = vadd.f32 %v149, 0.0001
        %v214 = vadd.f32 %v150, 0.0001
        %v215 = vadd.f32 %v151, 0.0001
        %v216 = vadd.f32 %v152, 0.0001
        %v217 = vadd.f32 %v153, 0.0001
        %v218 = vadd.f32 %v154, 0.0001
        %v219 = vadd.f32 %v155, 0.0001
        %v220 = vadd.f32 %v156, 0.0001
        %v221 = vadd.f32 %v157, 0.0001
        %v222 = vadd.f32 %v158, 0.0001
        %v223 = vadd.f32 %v159, 0.0001
        %v224 = vadd.f32 %v160, 0.0001
        %v225 = vadd.f32 %v161, 0.0001
        %v226 = vadd.f32 %v162, 0.0001
        %v227 = vadd.f32 %v163, 0.0001
        %v228 = vadd.f32 %v164, 0.0001
        %v229 = vadd.f32 %v165, 0.0001
        %v230 = vadd.f32 %v166, 0.0001
        %v231 = vadd.f32 %v167, 0.0001
        %v232 = vadd.f32 %v168, 0.0001
        %v233 = vadd.f32 %v169, 0.0001
        %v234 = vadd.f32 %v170, 0.0001
        %v235 = vadd.f32 %v171, 0.0001
        %v236 = vadd.f32 %v172, 0.0001
        %v237 = vadd.f32 %v173, 0.0001
        %v238 = vadd.f32 %v174, 0.0001
        %v239 = vadd.f32 %v175, 0.0001
        %v240 = vadd.f32 %v176, 0.0001
        %v241 = vadd.f32 %v177, 0.0001
        %v242 = vadd.f32 %v178, 0.0001
        %v243 = vadd.f32 %v179, 0.0001
        %v244 = vadd.f32 %v180, 0.0001
        %v245 = vadd.f32 %v181, 0.0001
        %v246 = vadd.f32 %v182, 0.0001
        %v247 = vadd.f32 %v183, 0.0001
        %v248 = vadd.f32 %v184, 0.0001
        %v249 = vadd.f32 %v185, 0.0001
        %v250 = vadd.f32 %v186, 0.0001
        %v251 = vadd.f32 %v187, 0.0001
        %v252 = vadd.f32 %v188, 0.0001
        %v253 = vadd.f32 %v189, 0.0001
        %v254 = vadd.f32 %v190, 0.0001
        %v255 = vadd.f32 %v191, 0.0001
        %v256 = vadd.f32 %v192, 0.0001
        %v257 = vadd.f32 %v193, 0.0001
        %v258 = vadd.f32 %v194, 0.0001
        %v259 = vadd.f32 %v195, 0.0001
        %v260 = vadd.f32 %v196, 0.0001
        %v261 = vadd.f32 %v197, 0.0001
        %v262 = vadd.f32 %v198, 0.0001
        %v263 = vadd.f32 %v199, 0.0001
        %v264 = vadd.f32 %v200, 0.0001
        %v265 = vadd.f32 %v201, 0.0001
        %v266 = vadd.f32 %v202, %v203
        %v267 = vadd.f32 %v266, %v204
        %v268 = vadd.f32 %v267, %v205
        %v269 = vadd.f32 %v268, %v206
        %v270 = vadd.f32 %v269, %v207
        %v271 = vadd.f32 %v270, %v208
        %v272 = vadd.f32 %v271, %v209
        %v273 = vadd.f32 %v272, %v210
        %v274 = vadd.f32 %v273, %v211
        %v275 = vadd.f32 %v274, %v212
        %v276 = vadd.f32 %v275, %v213
        %v277 = vadd.f32 %v276, %v214
        %v278 = vadd.f32 %v277, %v215
        %v279 = vadd.f32 %v278, %v216
        %v280 = vadd.f32 %v279, %v217
        %v281 = vrot.slane %v280, 4
        %v282 = vadd.f32 %v280, %v281
        %v283 = vrot.slane %v282, 2
        %v284 = vadd.f32 %v282, %v283
        %v285 = vrot.slane %v284, 1
        %v286 = vadd.f32 %v284, %v285
        %v287 = vadd.f32 %v218, %v219
        %v288 = vadd.f32 %v287, %v220
        %v289 = vadd.f32 %v288, %v221
        %v290 = vadd.f32 %v289, %v222
        %v291 = vadd.f32 %v290, %v223
        %v292 = vadd.f32 %v291, %v224
        %v293 = vadd.f32 %v292, %v225
        %v294 = vadd.f32 %v293, %v226
        %v295 = vadd.f32 %v294, %v227
        %v296 = vadd.f32 %v295, %v228
        %v297 = vadd.f32 %v296, %v229
        %v298 = vadd.f32 %v297, %v230
        %v299 = vadd.f32 %v298, %v231
        %v300 = vadd.f32 %v299, %v232
        %v301 = vadd.f32 %v300, %v233
        %v302 = vrot.slane %v301, 4
        %v303 = vadd.f32 %v301, %v302
        %v304 = vrot.slane %v303, 2
        %v305 = vadd.f32 %v303, %v304
        %v306 = vrot.slane %v305, 1
        %v307 = vadd.f32 %v305, %v306
        %v308 = vadd.f32 %v234, %v235
        %v309 = vadd.f32 %v308, %v236
        %v310 = vadd.f32 %v309, %v237
        %v311 = vadd.f32 %v310, %v238
        %v312 = vadd.f32 %v311, %v239
        %v313 = vadd.f32 %v312, %v240
        %v314 = vadd.f32 %v313, %v241
        %v315 = vadd.f32 %v314, %v242
        %v316 = vadd.f32 %v315, %v243
        %v317 = vadd.f32 %v316, %v244
        %v318 = vadd.f32 %v317, %v245
        %v319 = vadd.f32 %v318, %v246
        %v320 = vadd.f32 %v319, %v247
        %v321 = vadd.f32 %v320, %v248
        %v322 = vadd.f32 %v321, %v249
        %v323 = vrot.slane %v322, 4
        %v324 = vadd.f32 %v322, %v323
        %v325 = vrot.slane %v324, 2
        %v326 = vadd.f32 %v324, %v325
        %v327 = vrot.slane %v326, 1
        %v328 = vadd.f32 %v326, %v327
        %v329 = vadd.f32 %v250, %v251
        %v330 = vadd.f32 %v329, %v252
        %v331 = vadd.f32 %v330, %v253
        %v332 = vadd.f32 %v331, %v254
        %v333 = vadd.f32 %v332, %v255
        %v334 = vadd.f32 %v333, %v256
        %v335 = vadd.f32 %v334, %v257
        %v336 = vadd.f32 %v335, %v258
        %v337 = vadd.f32 %v336, %v259
        %v338 = vadd.f32 %v337, %v260
        %v339 = vadd.f32 %v338, %v261
        %v340 = vadd.f32 %v339, %v262
        %v341 = vadd.f32 %v340, %v263
        %v342 = vadd.f32 %v341, %v264
        %v343 = vadd.f32 %v342, %v265
        %v344 = vrot.slane %v343, 4
        %v345 = vadd.f32 %v343, %v344
        %v346 = vrot.slane %v345, 2
        %v347 = vadd.f32 %v345, %v346
        %v348 = vrot.slane %v347, 1
        %v349 = vadd.f32 %v347, %v348
        %v350 = vrcp.pop %v286
        %v351 = vrcp.pop %v307
        %v352 = vrcp.pop %v328
        %v353 = vrcp.pop %v349
        %v354 = vmul.f32 %v202, %v350
        %v355 = vmul.f32 %v203, %v350
        %v356 = vmul.f32 %v204, %v350
        %v357 = vmul.f32 %v205, %v350
        %v358 = vmul.f32 %v206, %v350
        %v359 = vmul.f32 %v207, %v350
        %v360 = vmul.f32 %v208, %v350
        %v361 = vmul.f32 %v209, %v350
        %v362 = vmul.f32 %v210, %v350
        %v363 = vmul.f32 %v211, %v350
        %v364 = vmul.f32 %v212, %v350
        %v365 = vmul.f32 %v213, %v350
        %v366 = vmul.f32 %v214, %v350
        %v367 = vmul.f32 %v215, %v350
        %v368 = vmul.f32 %v216, %v350
        %v369 = vmul.f32 %v217, %v350
        %v370 = vmul.f32 %v218, %v351
        %v371 = vmul.f32 %v219, %v351
        %v372 = vmul.f32 %v220, %v351
        %v373 = vmul.f32 %v221, %v351
        %v374 = vmul.f32 %v222, %v351
        %v375 = vmul.f32 %v223, %v351
        %v376 = vmul.f32 %v224, %v351
        %v377 = vmul.f32 %v225, %v351
        %v378 = vmul.f32 %v226, %v351
        %v379 = vmul.f32 %v227, %v351
        %v380 = vmul.f32 %v228, %v351
        %v381 = vmul.f32 %v229, %v351
        %v382 = vmul.f32 %v230, %v351
        %v383 = vmul.f32 %v231, %v351
        %v384 = vmul.f32 %v232, %v351
        %v385 = vmul.f32 %v233, %v351
        %v386 = vmul.f32 %v234, %v352
        %v387 = vmul.f32 %v235, %v352
        %v388 = vmul.f32 %v236, %v352
        %v389 = vmul.f32 %v237, %v352
        %v390 = vmul.f32 %v238, %v352
        %v391 = vmul.f32 %v239, %v352
        %v392 = vmul.f32 %v240, %v352
        %v393 = vmul.f32 %v241, %v352
        %v394 = vmul.f32 %v242, %v352
        %v395 = vmul.f32 %v243, %v352
        %v396 = vmul.f32 %v244, %v352
        %v397 = vmul.f32 %v245, %v352
        %v398 = vmul.f32 %v246, %v352
        %v399 = vmul.f32 %v247, %v352
        %v400 = vmul.f32 %v248, %v352
        %v401 = vmul.f32 %v249, %v352
        %v402 = vmul.f32 %v250, %v353
        %v403 = vmul.f32 %v251, %v353
        %v404 = vmul.f32 %v252, %v353
        %v405 = vmul.f32 %v253, %v353
        %v406 = vmul.f32 %v254, %v353
        %v407 = vmul.f32 %v255, %v353
        %v408 = vmul.f32 %v256, %v353
        %v409 = vmul.f32 %v257, %v353
        %v410 = vmul.f32 %v258, %v353
        %v411 = vmul.f32 %v259, %v353
        %v412 = vmul.f32 %v260, %v353
        %v413 = vmul.f32 %v261, %v353
        %v414 = vmul.f32 %v262, %v353
        %v415 = vmul.f32 %v263, %v353
        %v416 = vmul.f32 %v264, %v353
        %v417 = vmul.f32 %v265, %v353
        %418 = vadd.xlane.f32.xlu0 %v354
        %v419 = vpop.xlane.xlu0 %418
        %420 = vadd.xlane.f32.xlu0 %v355
        %v421 = vpop.xlane.xlu0 %420
        %422 = vadd.xlane.f32.xlu0 %v356
        %v423 = vpop.xlane.xlu0 %422
        %424 = vadd.xlane.f32.xlu0 %v357
        %v425 = vpop.xlane.xlu0 %424
        %426 = vadd.xlane.f32.xlu0 %v358
        %v427 = vpop.xlane.xlu0 %426
        %428 = vadd.xlane.f32.xlu0 %v359
        %v429 = vpop.xlane.xlu0 %428
        %430 = vadd.xlane.f32.xlu0 %v360
        %v431 = vpop.xlane.xlu0 %430
        %432 = vadd.xlane.f32.xlu0 %v361
        %v433 = vpop.xlane.xlu0 %432
        %434 = vadd.xlane.f32.xlu0 %v362
        %v435 = vpop.xlane.xlu0 %434
        %436 = vadd.xlane.f32.xlu0 %v363
        %v437 = vpop.xlane.xlu0 %436
        %438 = vadd.xlane.f32.xlu0 %v364
        %v439 = vpop.xlane.xlu0 %438
        %440 = vadd.xlane.f32.xlu0 %v365
        %v441 = vpop.xlane.xlu0 %440
        %442 = vadd.xlane.f32.xlu0 %v366
        %v443 = vpop.xlane.xlu0 %442
        %444 = vadd.xlane.f32.xlu0 %v367
        %v445 = vpop.xlane.xlu0 %444
        %446 = vadd.xlane.f32.xlu0 %v368
        %v447 = vpop.xlane.xlu0 %446
        %448 = vadd.xlane.f32.xlu0 %v369
        %v449 = vpop.xlane.xlu0 %448
        %450 = vadd.xlane.f32.xlu0 %v370
        %v451 = vpop.xlane.xlu0 %450
        %452 = vadd.xlane.f32.xlu0 %v371
        %v453 = vpop.xlane.xlu0 %452
        %454 = vadd.xlane.f32.xlu0 %v372
        %v455 = vpop.xlane.xlu0 %454
        %456 = vadd.xlane.f32.xlu0 %v373
        %v457 = vpop.xlane.xlu0 %456
        %458 = vadd.xlane.f32.xlu0 %v374
        %v459 = vpop.xlane.xlu0 %458
        %460 = vadd.xlane.f32.xlu0 %v375
        %v461 = vpop.xlane.xlu0 %460
        %462 = vadd.xlane.f32.xlu0 %v376
        %v463 = vpop.xlane.xlu0 %462
        %464 = vadd.xlane.f32.xlu0 %v377
        %v465 = vpop.xlane.xlu0 %464
        %466 = vadd.xlane.f32.xlu0 %v378
        %v467 = vpop.xlane.xlu0 %466
        %468 = vadd.xlane.f32.xlu0 %v379
        %v469 = vpop.xlane.xlu0 %468
        %470 = vadd.xlane.f32.xlu0 %v380
        %v471 = vpop.xlane.xlu0 %470
        %472 = vadd.xlane.f32.xlu0 %v381
        %v473 = vpop.xlane.xlu0 %472
        %474 = vadd.xlane.f32.xlu0 %v382
        %v475 = vpop.xlane.xlu0 %474
        %476 = vadd.xlane.f32.xlu0 %v383
        %v477 = vpop.xlane.xlu0 %476
        %478 = vadd.xlane.f32.xlu0 %v384
        %v479 = vpop.xlane.xlu0 %478
        %480 = vadd.xlane.f32.xlu0 %v385
        %v481 = vpop.xlane.xlu0 %480
        %482 = vadd.xlane.f32.xlu0 %v386
        %v483 = vpop.xlane.xlu0 %482
        %484 = vadd.xlane.f32.xlu0 %v387
        %v485 = vpop.xlane.xlu0 %484
        %486 = vadd.xlane.f32.xlu0 %v388
        %v487 = vpop.xlane.xlu0 %486
        %488 = vadd.xlane.f32.xlu0 %v389
        %v489 = vpop.xlane.xlu0 %488
        %490 = vadd.xlane.f32.xlu0 %v390
        %v491 = vpop.xlane.xlu0 %490
        %492 = vadd.xlane.f32.xlu0 %v391
        %v493 = vpop.xlane.xlu0 %492
        %494 = vadd.xlane.f32.xlu0 %v392
        %v495 = vpop.xlane.xlu0 %494
        %496 = vadd.xlane.f32.xlu0 %v393
        %v497 = vpop.xlane.xlu0 %496
        %498 = vadd.xlane.f32.xlu0 %v394
        %v499 = vpop.xlane.xlu0 %498
        %500 = vadd.xlane.f32.xlu0 %v395
        %v501 = vpop.xlane.xlu0 %500
        %502 = vadd.xlane.f32.xlu0 %v396
        %v503 = vpop.xlane.xlu0 %502
        %504 = vadd.xlane.f32.xlu0 %v397
        %v505 = vpop.xlane.xlu0 %504
        %506 = vadd.xlane.f32.xlu0 %v398
        %v507 = vpop.xlane.xlu0 %506
        %508 = vadd.xlane.f32.xlu0 %v399
        %v509 = vpop.xlane.xlu0 %508
        %510 = vadd.xlane.f32.xlu0 %v400
        %v511 = vpop.xlane.xlu0 %510
        %512 = vadd.xlane.f32.xlu0 %v401
        %v513 = vpop.xlane.xlu0 %512
        %514 = vadd.xlane.f32.xlu0 %v402
        %v515 = vpop.xlane.xlu0 %514
        %516 = vadd.xlane.f32.xlu0 %v403
        %v517 = vpop.xlane.xlu0 %516
        %518 = vadd.xlane.f32.xlu0 %v404
        %v519 = vpop.xlane.xlu0 %518
        %520 = vadd.xlane.f32.xlu0 %v405
        %v521 = vpop.xlane.xlu0 %520
        %522 = vadd.xlane.f32.xlu0 %v406
        %v523 = vpop.xlane.xlu0 %522
        %524 = vadd.xlane.f32.xlu0 %v407
        %v525 = vpop.xlane.xlu0 %524
        %526 = vadd.xlane.f32.xlu0 %v408
        %v527 = vpop.xlane.xlu0 %526
        %528 = vadd.xlane.f32.xlu0 %v409
        %v529 = vpop.xlane.xlu0 %528
        %530 = vadd.xlane.f32.xlu0 %v410
        %v531 = vpop.xlane.xlu0 %530
        %532 = vadd.xlane.f32.xlu0 %v411
        %v533 = vpop.xlane.xlu0 %532
        %534 = vadd.xlane.f32.xlu0 %v412
        %v535 = vpop.xlane.xlu0 %534
        %536 = vadd.xlane.f32.xlu0 %v413
        %v537 = vpop.xlane.xlu0 %536
        %538 = vadd.xlane.f32.xlu0 %v414
        %v539 = vpop.xlane.xlu0 %538
        %540 = vadd.xlane.f32.xlu0 %v415
        %v541 = vpop.xlane.xlu0 %540
        %542 = vadd.xlane.f32.xlu0 %v416
        %v543 = vpop.xlane.xlu0 %542
        %544 = vadd.xlane.f32.xlu0 %v417
        %v545 = vpop.xlane.xlu0 %544
        %v546 = vrcp.pop %v419
        %v547 = vrcp.pop %v421
        %v548 = vrcp.pop %v423
        %v549 = vrcp.pop %v425
        %v550 = vrcp.pop %v427
        %v551 = vrcp.pop %v429
        %v552 = vrcp.pop %v431
        %v553 = vrcp.pop %v433
        %v554 = vrcp.pop %v435
        %v555 = vrcp.pop %v437
        %v556 = vrcp.pop %v439
        %v557 = vrcp.pop %v441
        %v558 = vrcp.pop %v443
        %v559 = vrcp.pop %v445
        %v560 = vrcp.pop %v447
        %v561 = vrcp.pop %v449
        %v562 = vrcp.pop %v451
        %v563 = vrcp.pop %v453
        %v564 = vrcp.pop %v455
        %v565 = vrcp.pop %v457
        %v566 = vrcp.pop %v459
        %v567 = vrcp.pop %v461
        %v568 = vrcp.pop %v463
        %v569 = vrcp.pop %v465
        %v570 = vrcp.pop %v467
        %v571 = vrcp.pop %v469
        %v572 = vrcp.pop %v471
        %v573 = vrcp.pop %v473
        %v574 = vrcp.pop %v475
        %v575 = vrcp.pop %v477
        %v576 = vrcp.pop %v479
        %v577 = vrcp.pop %v481
        %v578 = vrcp.pop %v483
        %v579 = vrcp.pop %v485
        %v580 = vrcp.pop %v487
        %v581 = vrcp.pop %v489
        %v582 = vrcp.pop %v491
        %v583 = vrcp.pop %v493
        %v584 = vrcp.pop %v495
        %v585 = vrcp.pop %v497
        %v586 = vrcp.pop %v499
        %v587 = vrcp.pop %v501
        %v588 = vrcp.pop %v503
        %v589 = vrcp.pop %v505
        %v590 = vrcp.pop %v507
        %v591 = vrcp.pop %v509
        %v592 = vrcp.pop %v511
        %v593 = vrcp.pop %v513
        %v594 = vrcp.pop %v515
        %v595 = vrcp.pop %v517
        %v596 = vrcp.pop %v519
        %v597 = vrcp.pop %v521
        %v598 = vrcp.pop %v523
        %v599 = vrcp.pop %v525
        %v600 = vrcp.pop %v527
        %v601 = vrcp.pop %v529
        %v602 = vrcp.pop %v531
        %v603 = vrcp.pop %v533
        %v604 = vrcp.pop %v535
        %v605 = vrcp.pop %v537
        %v606 = vrcp.pop %v539
        %v607 = vrcp.pop %v541
        %v608 = vrcp.pop %v543
        %v609 = vrcp.pop %v545
        %v610 = vmul.f32 %v202, %v546
        %v611 = vmul.f32 %v203, %v547
        %v612 = vmul.f32 %v204, %v548
        %v613 = vmul.f32 %v205, %v549
        %v614 = vmul.f32 %v206, %v550
        %v615 = vmul.f32 %v207, %v551
        %v616 = vmul.f32 %v208, %v552
        %v617 = vmul.f32 %v209, %v553
        %v618 = vmul.f32 %v210, %v554
        %v619 = vmul.f32 %v211, %v555
        %v620 = vmul.f32 %v212, %v556
        %v621 = vmul.f32 %v213, %v557
        %v622 = vmul.f32 %v214, %v558
        %v623 = vmul.f32 %v215, %v559
        %v624 = vmul.f32 %v216, %v560
        %v625 = vmul.f32 %v217, %v561
        %v626 = vmul.f32 %v218, %v562
        %v627 = vmul.f32 %v219, %v563
        %v628 = vmul.f32 %v220, %v564
        %v629 = vmul.f32 %v221, %v565
        %v630 = vmul.f32 %v222, %v566
        %v631 = vmul.f32 %v223, %v567
        %v632 = vmul.f32 %v224, %v568
        %v633 = vmul.f32 %v225, %v569
        %v634 = vmul.f32 %v226, %v570
        %v635 = vmul.f32 %v227, %v571
        %v636 = vmul.f32 %v228, %v572
        %v637 = vmul.f32 %v229, %v573
        %v638 = vmul.f32 %v230, %v574
        %v639 = vmul.f32 %v231, %v575
        %v640 = vmul.f32 %v232, %v576
        %v641 = vmul.f32 %v233, %v577
        %v642 = vmul.f32 %v234, %v578
        %v643 = vmul.f32 %v235, %v579
        %v644 = vmul.f32 %v236, %v580
        %v645 = vmul.f32 %v237, %v581
        %v646 = vmul.f32 %v238, %v582
        %v647 = vmul.f32 %v239, %v583
        %v648 = vmul.f32 %v240, %v584
        %v649 = vmul.f32 %v241, %v585
        %v650 = vmul.f32 %v242, %v586
        %v651 = vmul.f32 %v243, %v587
        %v652 = vmul.f32 %v244, %v588
        %v653 = vmul.f32 %v245, %v589
        %v654 = vmul.f32 %v246, %v590
        %v655 = vmul.f32 %v247, %v591
        %v656 = vmul.f32 %v248, %v592
        %v657 = vmul.f32 %v249, %v593
        %v658 = vmul.f32 %v250, %v594
        %v659 = vmul.f32 %v251, %v595
        %v660 = vmul.f32 %v252, %v596
        %v661 = vmul.f32 %v253, %v597
        %v662 = vmul.f32 %v254, %v598
        %v663 = vmul.f32 %v255, %v599
        %v664 = vmul.f32 %v256, %v600
        %v665 = vmul.f32 %v257, %v601
        %v666 = vmul.f32 %v258, %v602
        %v667 = vmul.f32 %v259, %v603
        %v668 = vmul.f32 %v260, %v604
        %v669 = vmul.f32 %v261, %v605
        %v670 = vmul.f32 %v262, %v606
        %v671 = vmul.f32 %v263, %v607
        %v672 = vmul.f32 %v264, %v608
        %v673 = vmul.f32 %v265, %v609
        %v674 = vadd.f32 %v610, %v611
        %v675 = vadd.f32 %v674, %v612
        %v676 = vadd.f32 %v675, %v613
        %v677 = vadd.f32 %v676, %v614
        %v678 = vadd.f32 %v677, %v615
        %v679 = vadd.f32 %v678, %v616
        %v680 = vadd.f32 %v679, %v617
        %v681 = vadd.f32 %v680, %v618
        %v682 = vadd.f32 %v681, %v619
        %v683 = vadd.f32 %v682, %v620
        %v684 = vadd.f32 %v683, %v621
        %v685 = vadd.f32 %v684, %v622
        %v686 = vadd.f32 %v685, %v623
        %v687 = vadd.f32 %v686, %v624
        %v688 = vadd.f32 %v687, %v625
        %v689 = vrot.slane %v688, 4
        %v690 = vadd.f32 %v688, %v689
        %v691 = vrot.slane %v690, 2
        %v692 = vadd.f32 %v690, %v691
        %v693 = vrot.slane %v692, 1
        %v694 = vadd.f32 %v692, %v693
        %v695 = vadd.f32 %v626, %v627
        %v696 = vadd.f32 %v695, %v628
        %v697 = vadd.f32 %v696, %v629
        %v698 = vadd.f32 %v697, %v630
        %v699 = vadd.f32 %v698, %v631
        %v700 = vadd.f32 %v699, %v632
        %v701 = vadd.f32 %v700, %v633
        %v702 = vadd.f32 %v701, %v634
        %v703 = vadd.f32 %v702, %v635
        %v704 = vadd.f32 %v703, %v636
        %v705 = vadd.f32 %v704, %v637
        %v706 = vadd.f32 %v705, %v638
        %v707 = vadd.f32 %v706, %v639
        %v708 = vadd.f32 %v707, %v640
        %v709 = vadd.f32 %v708, %v641
        %v710 = vrot.slane %v709, 4
        %v711 = vadd.f32 %v709, %v710
        %v712 = vrot.slane %v711, 2
        %v713 = vadd.f32 %v711, %v712
        %v714 = vrot.slane %v713, 1
        %v715 = vadd.f32 %v713, %v714
        %v716 = vadd.f32 %v642, %v643
        %v717 = vadd.f32 %v716, %v644
        %v718 = vadd.f32 %v717, %v645
        %v719 = vadd.f32 %v718, %v646
        %v720 = vadd.f32 %v719, %v647
        %v721 = vadd.f32 %v720, %v648
        %v722 = vadd.f32 %v721, %v649
        %v723 = vadd.f32 %v722, %v650
        %v724 = vadd.f32 %v723, %v651
        %v725 = vadd.f32 %v724, %v652
        %v726 = vadd.f32 %v725, %v653
        %v727 = vadd.f32 %v726, %v654
        %v728 = vadd.f32 %v727, %v655
        %v729 = vadd.f32 %v728, %v656
        %v730 = vadd.f32 %v729, %v657
        %v731 = vrot.slane %v730, 4
        %v732 = vadd.f32 %v730, %v731
        %v733 = vrot.slane %v732, 2
        %v734 = vadd.f32 %v732, %v733
        %v735 = vrot.slane %v734, 1
        %v736 = vadd.f32 %v734, %v735
        %v737 = vadd.f32 %v658, %v659
        %v738 = vadd.f32 %v737, %v660
        %v739 = vadd.f32 %v738, %v661
        %v740 = vadd.f32 %v739, %v662
        %v741 = vadd.f32 %v740, %v663
        %v742 = vadd.f32 %v741, %v664
        %v743 = vadd.f32 %v742, %v665
        %v744 = vadd.f32 %v743, %v666
        %v745 = vadd.f32 %v744, %v667
        %v746 = vadd.f32 %v745, %v668
        %v747 = vadd.f32 %v746, %v669
        %v748 = vadd.f32 %v747, %v670
        %v749 = vadd.f32 %v748, %v671
        %v750 = vadd.f32 %v749, %v672
        %v751 = vadd.f32 %v750, %v673
        %v752 = vrot.slane %v751, 4
        %v753 = vadd.f32 %v751, %v752
        %v754 = vrot.slane %v753, 2
        %v755 = vadd.f32 %v753, %v754
        %v756 = vrot.slane %v755, 1
        %v757 = vadd.f32 %v755, %v756
        %v758 = vrcp.pop %v694
        %v759 = vrcp.pop %v715
        %v760 = vrcp.pop %v736
        %v761 = vrcp.pop %v757
        %v762 = vmul.f32 %v202, %v758
        %v763 = vmul.f32 %v203, %v758
        %v764 = vmul.f32 %v204, %v758
        %v765 = vmul.f32 %v205, %v758
        %v766 = vmul.f32 %v206, %v758
        %v767 = vmul.f32 %v207, %v758
        %v768 = vmul.f32 %v208, %v758
        %v769 = vmul.f32 %v209, %v758
        %v770 = vmul.f32 %v210, %v758
        %v771 = vmul.f32 %v211, %v758
        %v772 = vmul.f32 %v212, %v758
        %v773 = vmul.f32 %v213, %v758
        %v774 = vmul.f32 %v214, %v758
        %v775 = vmul.f32 %v215, %v758
        %v776 = vmul.f32 %v216, %v758
        %v777 = vmul.f32 %v217, %v758
        %v778 = vmul.f32 %v218, %v759
        %v779 = vmul.f32 %v219, %v759
        %v780 = vmul.f32 %v220, %v759
        %v781 = vmul.f32 %v221, %v759
        %v782 = vmul.f32 %v222, %v759
        %v783 = vmul.f32 %v223, %v759
        %v784 = vmul.f32 %v224, %v759
        %v785 = vmul.f32 %v225, %v759
        %v786 = vmul.f32 %v226, %v759
        %v787 = vmul.f32 %v227, %v759
        %v788 = vmul.f32 %v228, %v759
        %v789 = vmul.f32 %v229, %v759
        %v790 = vmul.f32 %v230, %v759
        %v791 = vmul.f32 %v231, %v759
        %v792 = vmul.f32 %v232, %v759
        %v793 = vmul.f32 %v233, %v759
        %v794 = vmul.f32 %v234, %v760
        %v795 = vmul.f32 %v235, %v760
        %v796 = vmul.f32 %v236, %v760
        %v797 = vmul.f32 %v237, %v760
        %v798 = vmul.f32 %v238, %v760
        %v799 = vmul.f32 %v239, %v760
        %v800 = vmul.f32 %v240, %v760
        %v801 = vmul.f32 %v241, %v760
        %v802 = vmul.f32 %v242, %v760
        %v803 = vmul.f32 %v243, %v760
        %v804 = vmul.f32 %v244, %v760
        %v805 = vmul.f32 %v245, %v760
        %v806 = vmul.f32 %v246, %v760
        %v807 = vmul.f32 %v247, %v760
        %v808 = vmul.f32 %v248, %v760
        %v809 = vmul.f32 %v249, %v760
        %v810 = vmul.f32 %v250, %v761
        %v811 = vmul.f32 %v251, %v761
        %v812 = vmul.f32 %v252, %v761
        %v813 = vmul.f32 %v253, %v761
        %v814 = vmul.f32 %v254, %v761
        %v815 = vmul.f32 %v255, %v761
        %v816 = vmul.f32 %v256, %v761
        %v817 = vmul.f32 %v257, %v761
        %v818 = vmul.f32 %v258, %v761
        %v819 = vmul.f32 %v259, %v761
        %v820 = vmul.f32 %v260, %v761
        %v821 = vmul.f32 %v261, %v761
        %v822 = vmul.f32 %v262, %v761
        %v823 = vmul.f32 %v263, %v761
        %v824 = vmul.f32 %v264, %v761
        %v825 = vmul.f32 %v265, %v761
        %826 = vadd.xlane.f32.xlu0 %v762
        %v827 = vpop.xlane.xlu0 %826
        %828 = vadd.xlane.f32.xlu0 %v763
        %v829 = vpop.xlane.xlu0 %828
        %830 = vadd.xlane.f32.xlu0 %v764
        %v831 = vpop.xlane.xlu0 %830
        %832 = vadd.xlane.f32.xlu0 %v765
        %v833 = vpop.xlane.xlu0 %832
        %834 = vadd.xlane.f32.xlu0 %v766
        %v835 = vpop.xlane.xlu0 %834
        %836 = vadd.xlane.f32.xlu0 %v767
        %v837 = vpop.xlane.xlu0 %836
        %838 = vadd.xlane.f32.xlu0 %v768
        %v839 = vpop.xlane.xlu0 %838
        %840 = vadd.xlane.f32.xlu0 %v769
        %v841 = vpop.xlane.xlu0 %840
        %842 = vadd.xlane.f32.xlu0 %v770
        %v843 = vpop.xlane.xlu0 %842
        %844 = vadd.xlane.f32.xlu0 %v771
        %v845 = vpop.xlane.xlu0 %844
        %846 = vadd.xlane.f32.xlu0 %v772
        %v847 = vpop.xlane.xlu0 %846
        %848 = vadd.xlane.f32.xlu0 %v773
        %v849 = vpop.xlane.xlu0 %848
        %850 = vadd.xlane.f32.xlu0 %v774
        %v851 = vpop.xlane.xlu0 %850
        %852 = vadd.xlane.f32.xlu0 %v775
        %v853 = vpop.xlane.xlu0 %852
        %854 = vadd.xlane.f32.xlu0 %v776
        %v855 = vpop.xlane.xlu0 %854
        %856 = vadd.xlane.f32.xlu0 %v777
        %v857 = vpop.xlane.xlu0 %856
        %858 = vadd.xlane.f32.xlu0 %v778
        %v859 = vpop.xlane.xlu0 %858
        %860 = vadd.xlane.f32.xlu0 %v779
        %v861 = vpop.xlane.xlu0 %860
        %862 = vadd.xlane.f32.xlu0 %v780
        %v863 = vpop.xlane.xlu0 %862
        %864 = vadd.xlane.f32.xlu0 %v781
        %v865 = vpop.xlane.xlu0 %864
        %866 = vadd.xlane.f32.xlu0 %v782
        %v867 = vpop.xlane.xlu0 %866
        %868 = vadd.xlane.f32.xlu0 %v783
        %v869 = vpop.xlane.xlu0 %868
        %870 = vadd.xlane.f32.xlu0 %v784
        %v871 = vpop.xlane.xlu0 %870
        %872 = vadd.xlane.f32.xlu0 %v785
        %v873 = vpop.xlane.xlu0 %872
        %874 = vadd.xlane.f32.xlu0 %v786
        %v875 = vpop.xlane.xlu0 %874
        %876 = vadd.xlane.f32.xlu0 %v787
        %v877 = vpop.xlane.xlu0 %876
        %878 = vadd.xlane.f32.xlu0 %v788
        %v879 = vpop.xlane.xlu0 %878
        %880 = vadd.xlane.f32.xlu0 %v789
        %v881 = vpop.xlane.xlu0 %880
        %882 = vadd.xlane.f32.xlu0 %v790
        %v883 = vpop.xlane.xlu0 %882
        %884 = vadd.xlane.f32.xlu0 %v791
        %v885 = vpop.xlane.xlu0 %884
        %886 = vadd.xlane.f32.xlu0 %v792
        %v887 = vpop.xlane.xlu0 %886
        %888 = vadd.xlane.f32.xlu0 %v793
        %v889 = vpop.xlane.xlu0 %888
        %890 = vadd.xlane.f32.xlu0 %v794
        %v891 = vpop.xlane.xlu0 %890
        %892 = vadd.xlane.f32.xlu0 %v795
        %v893 = vpop.xlane.xlu0 %892
        %894 = vadd.xlane.f32.xlu0 %v796
        %v895 = vpop.xlane.xlu0 %894
        %896 = vadd.xlane.f32.xlu0 %v797
        %v897 = vpop.xlane.xlu0 %896
        %898 = vadd.xlane.f32.xlu0 %v798
        %v899 = vpop.xlane.xlu0 %898
        %900 = vadd.xlane.f32.xlu0 %v799
        %v901 = vpop.xlane.xlu0 %900
        %902 = vadd.xlane.f32.xlu0 %v800
        %v903 = vpop.xlane.xlu0 %902
        %904 = vadd.xlane.f32.xlu0 %v801
        %v905 = vpop.xlane.xlu0 %904
        %906 = vadd.xlane.f32.xlu0 %v802
        %v907 = vpop.xlane.xlu0 %906
        %908 = vadd.xlane.f32.xlu0 %v803
        %v909 = vpop.xlane.xlu0 %908
        %910 = vadd.xlane.f32.xlu0 %v804
        %v911 = vpop.xlane.xlu0 %910
        %912 = vadd.xlane.f32.xlu0 %v805
        %v913 = vpop.xlane.xlu0 %912
        %914 = vadd.xlane.f32.xlu0 %v806
        %v915 = vpop.xlane.xlu0 %914
        %916 = vadd.xlane.f32.xlu0 %v807
        %v917 = vpop.xlane.xlu0 %916
        %918 = vadd.xlane.f32.xlu0 %v808
        %v919 = vpop.xlane.xlu0 %918
        %920 = vadd.xlane.f32.xlu0 %v809
        %v921 = vpop.xlane.xlu0 %920
        %922 = vadd.xlane.f32.xlu0 %v810
        %v923 = vpop.xlane.xlu0 %922
        %924 = vadd.xlane.f32.xlu0 %v811
        %v925 = vpop.xlane.xlu0 %924
        %926 = vadd.xlane.f32.xlu0 %v812
        %v927 = vpop.xlane.xlu0 %926
        %928 = vadd.xlane.f32.xlu0 %v813
        %v929 = vpop.xlane.xlu0 %928
        %930 = vadd.xlane.f32.xlu0 %v814
        %v931 = vpop.xlane.xlu0 %930
        %932 = vadd.xlane.f32.xlu0 %v815
        %v933 = vpop.xlane.xlu0 %932
        %934 = vadd.xlane.f32.xlu0 %v816
        %v935 = vpop.xlane.xlu0 %934
        %936 = vadd.xlane.f32.xlu0 %v817
        %v937 = vpop.xlane.xlu0 %936
        %938 = vadd.xlane.f32.xlu0 %v818
        %v939 = vpop.xlane.xlu0 %938
        %940 = vadd.xlane.f32.xlu0 %v819
        %v941 = vpop.xlane.xlu0 %940
        %942 = vadd.xlane.f32.xlu0 %v820
        %v943 = vpop.xlane.xlu0 %942
        %944 = vadd.xlane.f32.xlu0 %v821
        %v945 = vpop.xlane.xlu0 %944
        %946 = vadd.xlane.f32.xlu0 %v822
        %v947 = vpop.xlane.xlu0 %946
        %948 = vadd.xlane.f32.xlu0 %v823
        %v949 = vpop.xlane.xlu0 %948
        %950 = vadd.xlane.f32.xlu0 %v824
        %v951 = vpop.xlane.xlu0 %950
        %952 = vadd.xlane.f32.xlu0 %v825
        %v953 = vpop.xlane.xlu0 %952
        %v954 = vrcp.pop %v827
        %v955 = vrcp.pop %v829
        %v956 = vrcp.pop %v831
        %v957 = vrcp.pop %v833
        %v958 = vrcp.pop %v835
        %v959 = vrcp.pop %v837
        %v960 = vrcp.pop %v839
        %v961 = vrcp.pop %v841
        %v962 = vrcp.pop %v843
        %v963 = vrcp.pop %v845
        %v964 = vrcp.pop %v847
        %v965 = vrcp.pop %v849
        %v966 = vrcp.pop %v851
        %v967 = vrcp.pop %v853
        %v968 = vrcp.pop %v855
        %v969 = vrcp.pop %v857
        %v970 = vrcp.pop %v859
        %v971 = vrcp.pop %v861
        %v972 = vrcp.pop %v863
        %v973 = vrcp.pop %v865
        %v974 = vrcp.pop %v867
        %v975 = vrcp.pop %v869
        %v976 = vrcp.pop %v871
        %v977 = vrcp.pop %v873
        %v978 = vrcp.pop %v875
        %v979 = vrcp.pop %v877
        %v980 = vrcp.pop %v879
        %v981 = vrcp.pop %v881
        %v982 = vrcp.pop %v883
        %v983 = vrcp.pop %v885
        %v984 = vrcp.pop %v887
        %v985 = vrcp.pop %v889
        %v986 = vrcp.pop %v891
        %v987 = vrcp.pop %v893
        %v988 = vrcp.pop %v895
        %v989 = vrcp.pop %v897
        %v990 = vrcp.pop %v899
        %v991 = vrcp.pop %v901
        %v992 = vrcp.pop %v903
        %v993 = vrcp.pop %v905
        %v994 = vrcp.pop %v907
        %v995 = vrcp.pop %v909
        %v996 = vrcp.pop %v911
        %v997 = vrcp.pop %v913
        %v998 = vrcp.pop %v915
        %v999 = vrcp.pop %v917
        %v1000 = vrcp.pop %v919
        %v1001 = vrcp.pop %v921
        %v1002 = vrcp.pop %v923
        %v1003 = vrcp.pop %v925
        %v1004 = vrcp.pop %v927
        %v1005 = vrcp.pop %v929
        %v1006 = vrcp.pop %v931
        %v1007 = vrcp.pop %v933
        %v1008 = vrcp.pop %v935
        %v1009 = vrcp.pop %v937
        %v1010 = vrcp.pop %v939
        %v1011 = vrcp.pop %v941
        %v1012 = vrcp.pop %v943
        %v1013 = vrcp.pop %v945
        %v1014 = vrcp.pop %v947
        %v1015 = vrcp.pop %v949
        %v1016 = vrcp.pop %v951
        %v1017 = vrcp.pop %v953
        %v1018 = vmul.f32 %v202, %v954
        %v1019 = vmul.f32 %v203, %v955
        %v1020 = vmul.f32 %v204, %v956
        %v1021 = vmul.f32 %v205, %v957
        %v1022 = vmul.f32 %v206, %v958
        %v1023 = vmul.f32 %v207, %v959
        %v1024 = vmul.f32 %v208, %v960
        %v1025 = vmul.f32 %v209, %v961
        %v1026 = vmul.f32 %v210, %v962
        %v1027 = vmul.f32 %v211, %v963
        %v1028 = vmul.f32 %v212, %v964
        %v1029 = vmul.f32 %v213, %v965
        %v1030 = vmul.f32 %v214, %v966
        %v1031 = vmul.f32 %v215, %v967
        %v1032 = vmul.f32 %v216, %v968
        %v1033 = vmul.f32 %v217, %v969
        %v1034 = vmul.f32 %v218, %v970
        %v1035 = vmul.f32 %v219, %v971
        %v1036 = vmul.f32 %v220, %v972
        %v1037 = vmul.f32 %v221, %v973
        %v1038 = vmul.f32 %v222, %v974
        %v1039 = vmul.f32 %v223, %v975
        %v1040 = vmul.f32 %v224, %v976
        %v1041 = vmul.f32 %v225, %v977
        %v1042 = vmul.f32 %v226, %v978
        %v1043 = vmul.f32 %v227, %v979
        %v1044 = vmul.f32 %v228, %v980
        %v1045 = vmul.f32 %v229, %v981
        %v1046 = vmul.f32 %v230, %v982
        %v1047 = vmul.f32 %v231, %v983
        %v1048 = vmul.f32 %v232, %v984
        %v1049 = vmul.f32 %v233, %v985
        %v1050 = vmul.f32 %v234, %v986
        %v1051 = vmul.f32 %v235, %v987
        %v1052 = vmul.f32 %v236, %v988
        %v1053 = vmul.f32 %v237, %v989
        %v1054 = vmul.f32 %v238, %v990
        %v1055 = vmul.f32 %v239, %v991
        %v1056 = vmul.f32 %v240, %v992
        %v1057 = vmul.f32 %v241, %v993
        %v1058 = vmul.f32 %v242, %v994
        %v1059 = vmul.f32 %v243, %v995
        %v1060 = vmul.f32 %v244, %v996
        %v1061 = vmul.f32 %v245, %v997
        %v1062 = vmul.f32 %v246, %v998
        %v1063 = vmul.f32 %v247, %v999
        %v1064 = vmul.f32 %v248, %v1000
        %v1065 = vmul.f32 %v249, %v1001
        %v1066 = vmul.f32 %v250, %v1002
        %v1067 = vmul.f32 %v251, %v1003
        %v1068 = vmul.f32 %v252, %v1004
        %v1069 = vmul.f32 %v253, %v1005
        %v1070 = vmul.f32 %v254, %v1006
        %v1071 = vmul.f32 %v255, %v1007
        %v1072 = vmul.f32 %v256, %v1008
        %v1073 = vmul.f32 %v257, %v1009
        %v1074 = vmul.f32 %v258, %v1010
        %v1075 = vmul.f32 %v259, %v1011
        %v1076 = vmul.f32 %v260, %v1012
        %v1077 = vmul.f32 %v261, %v1013
        %v1078 = vmul.f32 %v262, %v1014
        %v1079 = vmul.f32 %v263, %v1015
        %v1080 = vmul.f32 %v264, %v1016
        %v1081 = vmul.f32 %v265, %v1017
        %v1082 = vadd.f32 %v1018, %v1019
        %v1083 = vadd.f32 %v1082, %v1020
        %v1084 = vadd.f32 %v1083, %v1021
        %v1085 = vadd.f32 %v1084, %v1022
        %v1086 = vadd.f32 %v1085, %v1023
        %v1087 = vadd.f32 %v1086, %v1024
        %v1088 = vadd.f32 %v1087, %v1025
        %v1089 = vadd.f32 %v1088, %v1026
        %v1090 = vadd.f32 %v1089, %v1027
        %v1091 = vadd.f32 %v1090, %v1028
        %v1092 = vadd.f32 %v1091, %v1029
        %v1093 = vadd.f32 %v1092, %v1030
        %v1094 = vadd.f32 %v1093, %v1031
        %v1095 = vadd.f32 %v1094, %v1032
        %v1096 = vadd.f32 %v1095, %v1033
        %v1097 = vrot.slane %v1096, 4
        %v1098 = vadd.f32 %v1096, %v1097
        %v1099 = vrot.slane %v1098, 2
        %v1100 = vadd.f32 %v1098, %v1099
        %v1101 = vrot.slane %v1100, 1
        %v1102 = vadd.f32 %v1100, %v1101
        %v1103 = vadd.f32 %v1034, %v1035
        %v1104 = vadd.f32 %v1103, %v1036
        %v1105 = vadd.f32 %v1104, %v1037
        %v1106 = vadd.f32 %v1105, %v1038
        %v1107 = vadd.f32 %v1106, %v1039
        %v1108 = vadd.f32 %v1107, %v1040
        %v1109 = vadd.f32 %v1108, %v1041
        %v1110 = vadd.f32 %v1109, %v1042
        %v1111 = vadd.f32 %v1110, %v1043
        %v1112 = vadd.f32 %v1111, %v1044
        %v1113 = vadd.f32 %v1112, %v1045
        %v1114 = vadd.f32 %v1113, %v1046
        %v1115 = vadd.f32 %v1114, %v1047
        %v1116 = vadd.f32 %v1115, %v1048
        %v1117 = vadd.f32 %v1116, %v1049
        %v1118 = vrot.slane %v1117, 4
        %v1119 = vadd.f32 %v1117, %v1118
        %v1120 = vrot.slane %v1119, 2
        %v1121 = vadd.f32 %v1119, %v1120
        %v1122 = vrot.slane %v1121, 1
        %v1123 = vadd.f32 %v1121, %v1122
        %v1124 = vadd.f32 %v1050, %v1051
        %v1125 = vadd.f32 %v1124, %v1052
        %v1126 = vadd.f32 %v1125, %v1053
        %v1127 = vadd.f32 %v1126, %v1054
        %v1128 = vadd.f32 %v1127, %v1055
        %v1129 = vadd.f32 %v1128, %v1056
        %v1130 = vadd.f32 %v1129, %v1057
        %v1131 = vadd.f32 %v1130, %v1058
        %v1132 = vadd.f32 %v1131, %v1059
        %v1133 = vadd.f32 %v1132, %v1060
        %v1134 = vadd.f32 %v1133, %v1061
        %v1135 = vadd.f32 %v1134, %v1062
        %v1136 = vadd.f32 %v1135, %v1063
        %v1137 = vadd.f32 %v1136, %v1064
        %v1138 = vadd.f32 %v1137, %v1065
        %v1139 = vrot.slane %v1138, 4
        %v1140 = vadd.f32 %v1138, %v1139
        %v1141 = vrot.slane %v1140, 2
        %v1142 = vadd.f32 %v1140, %v1141
        %v1143 = vrot.slane %v1142, 1
        %v1144 = vadd.f32 %v1142, %v1143
        %v1145 = vadd.f32 %v1066, %v1067
        %v1146 = vadd.f32 %v1145, %v1068
        %v1147 = vadd.f32 %v1146, %v1069
        %v1148 = vadd.f32 %v1147, %v1070
        %v1149 = vadd.f32 %v1148, %v1071
        %v1150 = vadd.f32 %v1149, %v1072
        %v1151 = vadd.f32 %v1150, %v1073
        %v1152 = vadd.f32 %v1151, %v1074
        %v1153 = vadd.f32 %v1152, %v1075
        %v1154 = vadd.f32 %v1153, %v1076
        %v1155 = vadd.f32 %v1154, %v1077
        %v1156 = vadd.f32 %v1155, %v1078
        %v1157 = vadd.f32 %v1156, %v1079
        %v1158 = vadd.f32 %v1157, %v1080
        %v1159 = vadd.f32 %v1158, %v1081
        %v1160 = vrot.slane %v1159, 4
        %v1161 = vadd.f32 %v1159, %v1160
        %v1162 = vrot.slane %v1161, 2
        %v1163 = vadd.f32 %v1161, %v1162
        %v1164 = vrot.slane %v1163, 1
        %v1165 = vadd.f32 %v1163, %v1164
        %v1166 = vrcp.pop %v1102
        %v1167 = vrcp.pop %v1123
        %v1168 = vrcp.pop %v1144
        %v1169 = vrcp.pop %v1165
        %v1170 = vmul.f32 %v202, %v1166
        %v1171 = vmul.f32 %v203, %v1166
        %v1172 = vmul.f32 %v204, %v1166
        %v1173 = vmul.f32 %v205, %v1166
        %v1174 = vmul.f32 %v206, %v1166
        %v1175 = vmul.f32 %v207, %v1166
        %v1176 = vmul.f32 %v208, %v1166
        %v1177 = vmul.f32 %v209, %v1166
        %v1178 = vmul.f32 %v210, %v1166
        %v1179 = vmul.f32 %v211, %v1166
        %v1180 = vmul.f32 %v212, %v1166
        %v1181 = vmul.f32 %v213, %v1166
        %v1182 = vmul.f32 %v214, %v1166
        %v1183 = vmul.f32 %v215, %v1166
        %v1184 = vmul.f32 %v216, %v1166
        %v1185 = vmul.f32 %v217, %v1166
        %v1186 = vmul.f32 %v218, %v1167
        %v1187 = vmul.f32 %v219, %v1167
        %v1188 = vmul.f32 %v220, %v1167
        %v1189 = vmul.f32 %v221, %v1167
        %v1190 = vmul.f32 %v222, %v1167
        %v1191 = vmul.f32 %v223, %v1167
        %v1192 = vmul.f32 %v224, %v1167
        %v1193 = vmul.f32 %v225, %v1167
        %v1194 = vmul.f32 %v226, %v1167
        %v1195 = vmul.f32 %v227, %v1167
        %v1196 = vmul.f32 %v228, %v1167
        %v1197 = vmul.f32 %v229, %v1167
        %v1198 = vmul.f32 %v230, %v1167
        %v1199 = vmul.f32 %v231, %v1167
        %v1200 = vmul.f32 %v232, %v1167
        %v1201 = vmul.f32 %v233, %v1167
        %v1202 = vmul.f32 %v234, %v1168
        %v1203 = vmul.f32 %v235, %v1168
        %v1204 = vmul.f32 %v236, %v1168
        %v1205 = vmul.f32 %v237, %v1168
        %v1206 = vmul.f32 %v238, %v1168
        %v1207 = vmul.f32 %v239, %v1168
        %v1208 = vmul.f32 %v240, %v1168
        %v1209 = vmul.f32 %v241, %v1168
        %v1210 = vmul.f32 %v242, %v1168
        %v1211 = vmul.f32 %v243, %v1168
        %v1212 = vmul.f32 %v244, %v1168
        %v1213 = vmul.f32 %v245, %v1168
        %v1214 = vmul.f32 %v246, %v1168
        %v1215 = vmul.f32 %v247, %v1168
        %v1216 = vmul.f32 %v248, %v1168
        %v1217 = vmul.f32 %v249, %v1168
        %v1218 = vmul.f32 %v250, %v1169
        %v1219 = vmul.f32 %v251, %v1169
        %v1220 = vmul.f32 %v252, %v1169
        %v1221 = vmul.f32 %v253, %v1169
        %v1222 = vmul.f32 %v254, %v1169
        %v1223 = vmul.f32 %v255, %v1169
        %v1224 = vmul.f32 %v256, %v1169
        %v1225 = vmul.f32 %v257, %v1169
        %v1226 = vmul.f32 %v258, %v1169
        %v1227 = vmul.f32 %v259, %v1169
        %v1228 = vmul.f32 %v260, %v1169
        %v1229 = vmul.f32 %v261, %v1169
        %v1230 = vmul.f32 %v262, %v1169
        %v1231 = vmul.f32 %v263, %v1169
        %v1232 = vmul.f32 %v264, %v1169
        %v1233 = vmul.f32 %v265, %v1169
        %1234 = vadd.xlane.f32.xlu0 %v1170
        %v1235 = vpop.xlane.xlu0 %1234
        %1236 = vadd.xlane.f32.xlu0 %v1171
        %v1237 = vpop.xlane.xlu0 %1236
        %1238 = vadd.xlane.f32.xlu0 %v1172
        %v1239 = vpop.xlane.xlu0 %1238
        %1240 = vadd.xlane.f32.xlu0 %v1173
        %v1241 = vpop.xlane.xlu0 %1240
        %1242 = vadd.xlane.f32.xlu0 %v1174
        %v1243 = vpop.xlane.xlu0 %1242
        %1244 = vadd.xlane.f32.xlu0 %v1175
        %v1245 = vpop.xlane.xlu0 %1244
        %1246 = vadd.xlane.f32.xlu0 %v1176
        %v1247 = vpop.xlane.xlu0 %1246
        %1248 = vadd.xlane.f32.xlu0 %v1177
        %v1249 = vpop.xlane.xlu0 %1248
        %1250 = vadd.xlane.f32.xlu0 %v1178
        %v1251 = vpop.xlane.xlu0 %1250
        %1252 = vadd.xlane.f32.xlu0 %v1179
        %v1253 = vpop.xlane.xlu0 %1252
        %1254 = vadd.xlane.f32.xlu0 %v1180
        %v1255 = vpop.xlane.xlu0 %1254
        %1256 = vadd.xlane.f32.xlu0 %v1181
        %v1257 = vpop.xlane.xlu0 %1256
        %1258 = vadd.xlane.f32.xlu0 %v1182
        %v1259 = vpop.xlane.xlu0 %1258
        %1260 = vadd.xlane.f32.xlu0 %v1183
        %v1261 = vpop.xlane.xlu0 %1260
        %1262 = vadd.xlane.f32.xlu0 %v1184
        %v1263 = vpop.xlane.xlu0 %1262
        %1264 = vadd.xlane.f32.xlu0 %v1185
        %v1265 = vpop.xlane.xlu0 %1264
        %1266 = vadd.xlane.f32.xlu0 %v1186
        %v1267 = vpop.xlane.xlu0 %1266
        %1268 = vadd.xlane.f32.xlu0 %v1187
        %v1269 = vpop.xlane.xlu0 %1268
        %1270 = vadd.xlane.f32.xlu0 %v1188
        %v1271 = vpop.xlane.xlu0 %1270
        %1272 = vadd.xlane.f32.xlu0 %v1189
        %v1273 = vpop.xlane.xlu0 %1272
        %1274 = vadd.xlane.f32.xlu0 %v1190
        %v1275 = vpop.xlane.xlu0 %1274
        %1276 = vadd.xlane.f32.xlu0 %v1191
        %v1277 = vpop.xlane.xlu0 %1276
        %1278 = vadd.xlane.f32.xlu0 %v1192
        %v1279 = vpop.xlane.xlu0 %1278
        %1280 = vadd.xlane.f32.xlu0 %v1193
        %v1281 = vpop.xlane.xlu0 %1280
        %1282 = vadd.xlane.f32.xlu0 %v1194
        %v1283 = vpop.xlane.xlu0 %1282
        %1284 = vadd.xlane.f32.xlu0 %v1195
        %v1285 = vpop.xlane.xlu0 %1284
        %1286 = vadd.xlane.f32.xlu0 %v1196
        %v1287 = vpop.xlane.xlu0 %1286
        %1288 = vadd.xlane.f32.xlu0 %v1197
        %v1289 = vpop.xlane.xlu0 %1288
        %1290 = vadd.xlane.f32.xlu0 %v1198
        %v1291 = vpop.xlane.xlu0 %1290
        %1292 = vadd.xlane.f32.xlu0 %v1199
        %v1293 = vpop.xlane.xlu0 %1292
        %1294 = vadd.xlane.f32.xlu0 %v1200
        %v1295 = vpop.xlane.xlu0 %1294
        %1296 = vadd.xlane.f32.xlu0 %v1201
        %v1297 = vpop.xlane.xlu0 %1296
        %1298 = vadd.xlane.f32.xlu0 %v1202
        %v1299 = vpop.xlane.xlu0 %1298
        %1300 = vadd.xlane.f32.xlu0 %v1203
        %v1301 = vpop.xlane.xlu0 %1300
        %1302 = vadd.xlane.f32.xlu0 %v1204
        %v1303 = vpop.xlane.xlu0 %1302
        %1304 = vadd.xlane.f32.xlu0 %v1205
        %v1305 = vpop.xlane.xlu0 %1304
        %1306 = vadd.xlane.f32.xlu0 %v1206
        %v1307 = vpop.xlane.xlu0 %1306
        %1308 = vadd.xlane.f32.xlu0 %v1207
        %v1309 = vpop.xlane.xlu0 %1308
        %1310 = vadd.xlane.f32.xlu0 %v1208
        %v1311 = vpop.xlane.xlu0 %1310
        %1312 = vadd.xlane.f32.xlu0 %v1209
        %v1313 = vpop.xlane.xlu0 %1312
        %1314 = vadd.xlane.f32.xlu0 %v1210
        %v1315 = vpop.xlane.xlu0 %1314
        %1316 = vadd.xlane.f32.xlu0 %v1211
        %v1317 = vpop.xlane.xlu0 %1316
        %1318 = vadd.xlane.f32.xlu0 %v1212
        %v1319 = vpop.xlane.xlu0 %1318
        %1320 = vadd.xlane.f32.xlu0 %v1213
        %v1321 = vpop.xlane.xlu0 %1320
        %1322 = vadd.xlane.f32.xlu0 %v1214
        %v1323 = vpop.xlane.xlu0 %1322
        %1324 = vadd.xlane.f32.xlu0 %v1215
        %v1325 = vpop.xlane.xlu0 %1324
        %1326 = vadd.xlane.f32.xlu0 %v1216
        %v1327 = vpop.xlane.xlu0 %1326
        %1328 = vadd.xlane.f32.xlu0 %v1217
        %v1329 = vpop.xlane.xlu0 %1328
        %1330 = vadd.xlane.f32.xlu0 %v1218
        %v1331 = vpop.xlane.xlu0 %1330
        %1332 = vadd.xlane.f32.xlu0 %v1219
        %v1333 = vpop.xlane.xlu0 %1332
        %1334 = vadd.xlane.f32.xlu0 %v1220
        %v1335 = vpop.xlane.xlu0 %1334
        %1336 = vadd.xlane.f32.xlu0 %v1221
        %v1337 = vpop.xlane.xlu0 %1336
        %1338 = vadd.xlane.f32.xlu0 %v1222
        %v1339 = vpop.xlane.xlu0 %1338
        %1340 = vadd.xlane.f32.xlu0 %v1223
        %v1341 = vpop.xlane.xlu0 %1340
        %1342 = vadd.xlane.f32.xlu0 %v1224
        %v1343 = vpop.xlane.xlu0 %1342
        %1344 = vadd.xlane.f32.xlu0 %v1225
        %v1345 = vpop.xlane.xlu0 %1344
        %1346 = vadd.xlane.f32.xlu0 %v1226
        %v1347 = vpop.xlane.xlu0 %1346
        %1348 = vadd.xlane.f32.xlu0 %v1227
        %v1349 = vpop.xlane.xlu0 %1348
        %1350 = vadd.xlane.f32.xlu0 %v1228
        %v1351 = vpop.xlane.xlu0 %1350
        %1352 = vadd.xlane.f32.xlu0 %v1229
        %v1353 = vpop.xlane.xlu0 %1352
        %1354 = vadd.xlane.f32.xlu0 %v1230
        %v1355 = vpop.xlane.xlu0 %1354
        %1356 = vadd.xlane.f32.xlu0 %v1231
        %v1357 = vpop.xlane.xlu0 %1356
        %1358 = vadd.xlane.f32.xlu0 %v1232
        %v1359 = vpop.xlane.xlu0 %1358
        %1360 = vadd.xlane.f32.xlu0 %v1233
        %v1361 = vpop.xlane.xlu0 %1360
        %v1362 = vrcp.pop %v1235
        %v1363 = vrcp.pop %v1237
        %v1364 = vrcp.pop %v1239
        %v1365 = vrcp.pop %v1241
        %v1366 = vrcp.pop %v1243
        %v1367 = vrcp.pop %v1245
        %v1368 = vrcp.pop %v1247
        %v1369 = vrcp.pop %v1249
        %v1370 = vrcp.pop %v1251
        %v1371 = vrcp.pop %v1253
        %v1372 = vrcp.pop %v1255
        %v1373 = vrcp.pop %v1257
        %v1374 = vrcp.pop %v1259
        %v1375 = vrcp.pop %v1261
        %v1376 = vrcp.pop %v1263
        %v1377 = vrcp.pop %v1265
        %v1378 = vrcp.pop %v1267
        %v1379 = vrcp.pop %v1269
        %v1380 = vrcp.pop %v1271
        %v1381 = vrcp.pop %v1273
        %v1382 = vrcp.pop %v1275
        %v1383 = vrcp.pop %v1277
        %v1384 = vrcp.pop %v1279
        %v1385 = vrcp.pop %v1281
        %v1386 = vrcp.pop %v1283
        %v1387 = vrcp.pop %v1285
        %v1388 = vrcp.pop %v1287
        %v1389 = vrcp.pop %v1289
        %v1390 = vrcp.pop %v1291
        %v1391 = vrcp.pop %v1293
        %v1392 = vrcp.pop %v1295
        %v1393 = vrcp.pop %v1297
        %v1394 = vrcp.pop %v1299
        %v1395 = vrcp.pop %v1301
        %v1396 = vrcp.pop %v1303
        %v1397 = vrcp.pop %v1305
        %v1398 = vrcp.pop %v1307
        %v1399 = vrcp.pop %v1309
        %v1400 = vrcp.pop %v1311
        %v1401 = vrcp.pop %v1313
        %v1402 = vrcp.pop %v1315
        %v1403 = vrcp.pop %v1317
        %v1404 = vrcp.pop %v1319
        %v1405 = vrcp.pop %v1321
        %v1406 = vrcp.pop %v1323
        %v1407 = vrcp.pop %v1325
        %v1408 = vrcp.pop %v1327
        %v1409 = vrcp.pop %v1329
        %v1410 = vrcp.pop %v1331
        %v1411 = vrcp.pop %v1333
        %v1412 = vrcp.pop %v1335
        %v1413 = vrcp.pop %v1337
        %v1414 = vrcp.pop %v1339
        %v1415 = vrcp.pop %v1341
        %v1416 = vrcp.pop %v1343
        %v1417 = vrcp.pop %v1345
        %v1418 = vrcp.pop %v1347
        %v1419 = vrcp.pop %v1349
        %v1420 = vrcp.pop %v1351
        %v1421 = vrcp.pop %v1353
        %v1422 = vrcp.pop %v1355
        %v1423 = vrcp.pop %v1357
        %v1424 = vrcp.pop %v1359
        %v1425 = vrcp.pop %v1361
        %v1426 = vmul.f32 %v202, %v1362
        %v1427 = vmul.f32 %v203, %v1363
        %v1428 = vmul.f32 %v204, %v1364
        %v1429 = vmul.f32 %v205, %v1365
        %v1430 = vmul.f32 %v206, %v1366
        %v1431 = vmul.f32 %v207, %v1367
        %v1432 = vmul.f32 %v208, %v1368
        %v1433 = vmul.f32 %v209, %v1369
        %v1434 = vmul.f32 %v210, %v1370
        %v1435 = vmul.f32 %v211, %v1371
        %v1436 = vmul.f32 %v212, %v1372
        %v1437 = vmul.f32 %v213, %v1373
        %v1438 = vmul.f32 %v214, %v1374
        %v1439 = vmul.f32 %v215, %v1375
        %v1440 = vmul.f32 %v216, %v1376
        %v1441 = vmul.f32 %v217, %v1377
        %v1442 = vmul.f32 %v218, %v1378
        %v1443 = vmul.f32 %v219, %v1379
        %v1444 = vmul.f32 %v220, %v1380
        %v1445 = vmul.f32 %v221, %v1381
        %v1446 = vmul.f32 %v222, %v1382
        %v1447 = vmul.f32 %v223, %v1383
        %v1448 = vmul.f32 %v224, %v1384
        %v1449 = vmul.f32 %v225, %v1385
        %v1450 = vmul.f32 %v226, %v1386
        %v1451 = vmul.f32 %v227, %v1387
        %v1452 = vmul.f32 %v228, %v1388
        %v1453 = vmul.f32 %v229, %v1389
        %v1454 = vmul.f32 %v230, %v1390
        %v1455 = vmul.f32 %v231, %v1391
        %v1456 = vmul.f32 %v232, %v1392
        %v1457 = vmul.f32 %v233, %v1393
        %v1458 = vmul.f32 %v234, %v1394
        %v1459 = vmul.f32 %v235, %v1395
        %v1460 = vmul.f32 %v236, %v1396
        %v1461 = vmul.f32 %v237, %v1397
        %v1462 = vmul.f32 %v238, %v1398
        %v1463 = vmul.f32 %v239, %v1399
        %v1464 = vmul.f32 %v240, %v1400
        %v1465 = vmul.f32 %v241, %v1401
        %v1466 = vmul.f32 %v242, %v1402
        %v1467 = vmul.f32 %v243, %v1403
        %v1468 = vmul.f32 %v244, %v1404
        %v1469 = vmul.f32 %v245, %v1405
        %v1470 = vmul.f32 %v246, %v1406
        %v1471 = vmul.f32 %v247, %v1407
        %v1472 = vmul.f32 %v248, %v1408
        %v1473 = vmul.f32 %v249, %v1409
        %v1474 = vmul.f32 %v250, %v1410
        %v1475 = vmul.f32 %v251, %v1411
        %v1476 = vmul.f32 %v252, %v1412
        %v1477 = vmul.f32 %v253, %v1413
        %v1478 = vmul.f32 %v254, %v1414
        %v1479 = vmul.f32 %v255, %v1415
        %v1480 = vmul.f32 %v256, %v1416
        %v1481 = vmul.f32 %v257, %v1417
        %v1482 = vmul.f32 %v258, %v1418
        %v1483 = vmul.f32 %v259, %v1419
        %v1484 = vmul.f32 %v260, %v1420
        %v1485 = vmul.f32 %v261, %v1421
        %v1486 = vmul.f32 %v262, %v1422
        %v1487 = vmul.f32 %v263, %v1423
        %v1488 = vmul.f32 %v264, %v1424
        %v1489 = vmul.f32 %v265, %v1425
        %v1490 = vadd.f32 %v1426, %v1427
        %v1491 = vadd.f32 %v1490, %v1428
        %v1492 = vadd.f32 %v1491, %v1429
        %v1493 = vadd.f32 %v1492, %v1430
        %v1494 = vadd.f32 %v1493, %v1431
        %v1495 = vadd.f32 %v1494, %v1432
        %v1496 = vadd.f32 %v1495, %v1433
        %v1497 = vadd.f32 %v1496, %v1434
        %v1498 = vadd.f32 %v1497, %v1435
        %v1499 = vadd.f32 %v1498, %v1436
        %v1500 = vadd.f32 %v1499, %v1437
        %v1501 = vadd.f32 %v1500, %v1438
        %v1502 = vadd.f32 %v1501, %v1439
        %v1503 = vadd.f32 %v1502, %v1440
        %v1504 = vadd.f32 %v1503, %v1441
        %v1505 = vrot.slane %v1504, 4
        %v1506 = vadd.f32 %v1504, %v1505
        %v1507 = vrot.slane %v1506, 2
        %v1508 = vadd.f32 %v1506, %v1507
        %v1509 = vrot.slane %v1508, 1
        %v1510 = vadd.f32 %v1508, %v1509
        %v1511 = vadd.f32 %v1442, %v1443
        %v1512 = vadd.f32 %v1511, %v1444
        %v1513 = vadd.f32 %v1512, %v1445
        %v1514 = vadd.f32 %v1513, %v1446
        %v1515 = vadd.f32 %v1514, %v1447
        %v1516 = vadd.f32 %v1515, %v1448
        %v1517 = vadd.f32 %v1516, %v1449
        %v1518 = vadd.f32 %v1517, %v1450
        %v1519 = vadd.f32 %v1518, %v1451
        %v1520 = vadd.f32 %v1519, %v1452
        %v1521 = vadd.f32 %v1520, %v1453
        %v1522 = vadd.f32 %v1521, %v1454
        %v1523 = vadd.f32 %v1522, %v1455
        %v1524 = vadd.f32 %v1523, %v1456
        %v1525 = vadd.f32 %v1524, %v1457
        %v1526 = vrot.slane %v1525, 4
        %v1527 = vadd.f32 %v1525, %v1526
        %v1528 = vrot.slane %v1527, 2
        %v1529 = vadd.f32 %v1527, %v1528
        %v1530 = vrot.slane %v1529, 1
        %v1531 = vadd.f32 %v1529, %v1530
        %v1532 = vadd.f32 %v1458, %v1459
        %v1533 = vadd.f32 %v1532, %v1460
        %v1534 = vadd.f32 %v1533, %v1461
        %v1535 = vadd.f32 %v1534, %v1462
        %v1536 = vadd.f32 %v1535, %v1463
        %v1537 = vadd.f32 %v1536, %v1464
        %v1538 = vadd.f32 %v1537, %v1465
        %v1539 = vadd.f32 %v1538, %v1466
        %v1540 = vadd.f32 %v1539, %v1467
        %v1541 = vadd.f32 %v1540, %v1468
        %v1542 = vadd.f32 %v1541, %v1469
        %v1543 = vadd.f32 %v1542, %v1470
        %v1544 = vadd.f32 %v1543, %v1471
        %v1545 = vadd.f32 %v1544, %v1472
        %v1546 = vadd.f32 %v1545, %v1473
        %v1547 = vrot.slane %v1546, 4
        %v1548 = vadd.f32 %v1546, %v1547
        %v1549 = vrot.slane %v1548, 2
        %v1550 = vadd.f32 %v1548, %v1549
        %v1551 = vrot.slane %v1550, 1
        %v1552 = vadd.f32 %v1550, %v1551
        %v1553 = vadd.f32 %v1474, %v1475
        %v1554 = vadd.f32 %v1553, %v1476
        %v1555 = vadd.f32 %v1554, %v1477
        %v1556 = vadd.f32 %v1555, %v1478
        %v1557 = vadd.f32 %v1556, %v1479
        %v1558 = vadd.f32 %v1557, %v1480
        %v1559 = vadd.f32 %v1558, %v1481
        %v1560 = vadd.f32 %v1559, %v1482
        %v1561 = vadd.f32 %v1560, %v1483
        %v1562 = vadd.f32 %v1561, %v1484
        %v1563 = vadd.f32 %v1562, %v1485
        %v1564 = vadd.f32 %v1563, %v1486
        %v1565 = vadd.f32 %v1564, %v1487
        %v1566 = vadd.f32 %v1565, %v1488
        %v1567 = vadd.f32 %v1566, %v1489
        %v1568 = vrot.slane %v1567, 4
        %v1569 = vadd.f32 %v1567, %v1568
        %v1570 = vrot.slane %v1569, 2
        %v1571 = vadd.f32 %v1569, %v1570
        %v1572 = vrot.slane %v1571, 1
        %v1573 = vadd.f32 %v1571, %v1572
        %v1574 = vrcp.pop %v1510
        %v1575 = vrcp.pop %v1531
        %v1576 = vrcp.pop %v1552
        %v1577 = vrcp.pop %v1573
        %v1578 = vmul.f32 %v202, %v1574
        %v1579 = vmul.f32 %v203, %v1574
        %v1580 = vmul.f32 %v204, %v1574
        %v1581 = vmul.f32 %v205, %v1574
        %v1582 = vmul.f32 %v206, %v1574
        %v1583 = vmul.f32 %v207, %v1574
        %v1584 = vmul.f32 %v208, %v1574
        %v1585 = vmul.f32 %v209, %v1574
        %v1586 = vmul.f32 %v210, %v1574
        %v1587 = vmul.f32 %v211, %v1574
        %v1588 = vmul.f32 %v212, %v1574
        %v1589 = vmul.f32 %v213, %v1574
        %v1590 = vmul.f32 %v214, %v1574
        %v1591 = vmul.f32 %v215, %v1574
        %v1592 = vmul.f32 %v216, %v1574
        %v1593 = vmul.f32 %v217, %v1574
        %v1594 = vmul.f32 %v218, %v1575
        %v1595 = vmul.f32 %v219, %v1575
        %v1596 = vmul.f32 %v220, %v1575
        %v1597 = vmul.f32 %v221, %v1575
        %v1598 = vmul.f32 %v222, %v1575
        %v1599 = vmul.f32 %v223, %v1575
        %v1600 = vmul.f32 %v224, %v1575
        %v1601 = vmul.f32 %v225, %v1575
        %v1602 = vmul.f32 %v226, %v1575
        %v1603 = vmul.f32 %v227, %v1575
        %v1604 = vmul.f32 %v228, %v1575
        %v1605 = vmul.f32 %v229, %v1575
        %v1606 = vmul.f32 %v230, %v1575
        %v1607 = vmul.f32 %v231, %v1575
        %v1608 = vmul.f32 %v232, %v1575
        %v1609 = vmul.f32 %v233, %v1575
        %v1610 = vmul.f32 %v234, %v1576
        %v1611 = vmul.f32 %v235, %v1576
        %v1612 = vmul.f32 %v236, %v1576
        %v1613 = vmul.f32 %v237, %v1576
        %v1614 = vmul.f32 %v238, %v1576
        %v1615 = vmul.f32 %v239, %v1576
        %v1616 = vmul.f32 %v240, %v1576
        %v1617 = vmul.f32 %v241, %v1576
        %v1618 = vmul.f32 %v242, %v1576
        %v1619 = vmul.f32 %v243, %v1576
        %v1620 = vmul.f32 %v244, %v1576
        %v1621 = vmul.f32 %v245, %v1576
        %v1622 = vmul.f32 %v246, %v1576
        %v1623 = vmul.f32 %v247, %v1576
        %v1624 = vmul.f32 %v248, %v1576
        %v1625 = vmul.f32 %v249, %v1576
        %v1626 = vmul.f32 %v250, %v1577
        %v1627 = vmul.f32 %v251, %v1577
        %v1628 = vmul.f32 %v252, %v1577
        %v1629 = vmul.f32 %v253, %v1577
        %v1630 = vmul.f32 %v254, %v1577
        %v1631 = vmul.f32 %v255, %v1577
        %v1632 = vmul.f32 %v256, %v1577
        %v1633 = vmul.f32 %v257, %v1577
        %v1634 = vmul.f32 %v258, %v1577
        %v1635 = vmul.f32 %v259, %v1577
        %v1636 = vmul.f32 %v260, %v1577
        %v1637 = vmul.f32 %v261, %v1577
        %v1638 = vmul.f32 %v262, %v1577
        %v1639 = vmul.f32 %v263, %v1577
        %v1640 = vmul.f32 %v264, %v1577
        %v1641 = vmul.f32 %v265, %v1577
        %1642 = vadd.xlane.f32.xlu0 %v1578
        %v1643 = vpop.xlane.xlu0 %1642
        %1644 = vadd.xlane.f32.xlu0 %v1579
        %v1645 = vpop.xlane.xlu0 %1644
        %1646 = vadd.xlane.f32.xlu0 %v1580
        %v1647 = vpop.xlane.xlu0 %1646
        %1648 = vadd.xlane.f32.xlu0 %v1581
        %v1649 = vpop.xlane.xlu0 %1648
        %1650 = vadd.xlane.f32.xlu0 %v1582
        %v1651 = vpop.xlane.xlu0 %1650
        %1652 = vadd.xlane.f32.xlu0 %v1583
        %v1653 = vpop.xlane.xlu0 %1652
        %1654 = vadd.xlane.f32.xlu0 %v1584
        %v1655 = vpop.xlane.xlu0 %1654
        %1656 = vadd.xlane.f32.xlu0 %v1585
        %v1657 = vpop.xlane.xlu0 %1656
        %1658 = vadd.xlane.f32.xlu0 %v1586
        %v1659 = vpop.xlane.xlu0 %1658
        %1660 = vadd.xlane.f32.xlu0 %v1587
        %v1661 = vpop.xlane.xlu0 %1660
        %1662 = vadd.xlane.f32.xlu0 %v1588
        %v1663 = vpop.xlane.xlu0 %1662
        %1664 = vadd.xlane.f32.xlu0 %v1589
        %v1665 = vpop.xlane.xlu0 %1664
        %1666 = vadd.xlane.f32.xlu0 %v1590
        %v1667 = vpop.xlane.xlu0 %1666
        %1668 = vadd.xlane.f32.xlu0 %v1591
        %v1669 = vpop.xlane.xlu0 %1668
        %1670 = vadd.xlane.f32.xlu0 %v1592
        %v1671 = vpop.xlane.xlu0 %1670
        %1672 = vadd.xlane.f32.xlu0 %v1593
        %v1673 = vpop.xlane.xlu0 %1672
        %1674 = vadd.xlane.f32.xlu0 %v1594
        %v1675 = vpop.xlane.xlu0 %1674
        %1676 = vadd.xlane.f32.xlu0 %v1595
        %v1677 = vpop.xlane.xlu0 %1676
        %1678 = vadd.xlane.f32.xlu0 %v1596
        %v1679 = vpop.xlane.xlu0 %1678
        %1680 = vadd.xlane.f32.xlu0 %v1597
        %v1681 = vpop.xlane.xlu0 %1680
        %1682 = vadd.xlane.f32.xlu0 %v1598
        %v1683 = vpop.xlane.xlu0 %1682
        %1684 = vadd.xlane.f32.xlu0 %v1599
        %v1685 = vpop.xlane.xlu0 %1684
        %1686 = vadd.xlane.f32.xlu0 %v1600
        %v1687 = vpop.xlane.xlu0 %1686
        %1688 = vadd.xlane.f32.xlu0 %v1601
        %v1689 = vpop.xlane.xlu0 %1688
        %1690 = vadd.xlane.f32.xlu0 %v1602
        %v1691 = vpop.xlane.xlu0 %1690
        %1692 = vadd.xlane.f32.xlu0 %v1603
        %v1693 = vpop.xlane.xlu0 %1692
        %1694 = vadd.xlane.f32.xlu0 %v1604
        %v1695 = vpop.xlane.xlu0 %1694
        %1696 = vadd.xlane.f32.xlu0 %v1605
        %v1697 = vpop.xlane.xlu0 %1696
        %1698 = vadd.xlane.f32.xlu0 %v1606
        %v1699 = vpop.xlane.xlu0 %1698
        %1700 = vadd.xlane.f32.xlu0 %v1607
        %v1701 = vpop.xlane.xlu0 %1700
        %1702 = vadd.xlane.f32.xlu0 %v1608
        %v1703 = vpop.xlane.xlu0 %1702
        %1704 = vadd.xlane.f32.xlu0 %v1609
        %v1705 = vpop.xlane.xlu0 %1704
        %1706 = vadd.xlane.f32.xlu0 %v1610
        %v1707 = vpop.xlane.xlu0 %1706
        %1708 = vadd.xlane.f32.xlu0 %v1611
        %v1709 = vpop.xlane.xlu0 %1708
        %1710 = vadd.xlane.f32.xlu0 %v1612
        %v1711 = vpop.xlane.xlu0 %1710
        %1712 = vadd.xlane.f32.xlu0 %v1613
        %v1713 = vpop.xlane.xlu0 %1712
        %1714 = vadd.xlane.f32.xlu0 %v1614
        %v1715 = vpop.xlane.xlu0 %1714
        %1716 = vadd.xlane.f32.xlu0 %v1615
        %v1717 = vpop.xlane.xlu0 %1716
        %1718 = vadd.xlane.f32.xlu0 %v1616
        %v1719 = vpop.xlane.xlu0 %1718
        %1720 = vadd.xlane.f32.xlu0 %v1617
        %v1721 = vpop.xlane.xlu0 %1720
        %1722 = vadd.xlane.f32.xlu0 %v1618
        %v1723 = vpop.xlane.xlu0 %1722
        %1724 = vadd.xlane.f32.xlu0 %v1619
        %v1725 = vpop.xlane.xlu0 %1724
        %1726 = vadd.xlane.f32.xlu0 %v1620
        %v1727 = vpop.xlane.xlu0 %1726
        %1728 = vadd.xlane.f32.xlu0 %v1621
        %v1729 = vpop.xlane.xlu0 %1728
        %1730 = vadd.xlane.f32.xlu0 %v1622
        %v1731 = vpop.xlane.xlu0 %1730
        %1732 = vadd.xlane.f32.xlu0 %v1623
        %v1733 = vpop.xlane.xlu0 %1732
        %1734 = vadd.xlane.f32.xlu0 %v1624
        %v1735 = vpop.xlane.xlu0 %1734
        %1736 = vadd.xlane.f32.xlu0 %v1625
        %v1737 = vpop.xlane.xlu0 %1736
        %1738 = vadd.xlane.f32.xlu0 %v1626
        %v1739 = vpop.xlane.xlu0 %1738
        %1740 = vadd.xlane.f32.xlu0 %v1627
        %v1741 = vpop.xlane.xlu0 %1740
        %1742 = vadd.xlane.f32.xlu0 %v1628
        %v1743 = vpop.xlane.xlu0 %1742
        %1744 = vadd.xlane.f32.xlu0 %v1629
        %v1745 = vpop.xlane.xlu0 %1744
        %1746 = vadd.xlane.f32.xlu0 %v1630
        %v1747 = vpop.xlane.xlu0 %1746
        %1748 = vadd.xlane.f32.xlu0 %v1631
        %v1749 = vpop.xlane.xlu0 %1748
        %1750 = vadd.xlane.f32.xlu0 %v1632
        %v1751 = vpop.xlane.xlu0 %1750
        %1752 = vadd.xlane.f32.xlu0 %v1633
        %v1753 = vpop.xlane.xlu0 %1752
        %1754 = vadd.xlane.f32.xlu0 %v1634
        %v1755 = vpop.xlane.xlu0 %1754
        %1756 = vadd.xlane.f32.xlu0 %v1635
        %v1757 = vpop.xlane.xlu0 %1756
        %1758 = vadd.xlane.f32.xlu0 %v1636
        %v1759 = vpop.xlane.xlu0 %1758
        %1760 = vadd.xlane.f32.xlu0 %v1637
        %v1761 = vpop.xlane.xlu0 %1760
        %1762 = vadd.xlane.f32.xlu0 %v1638
        %v1763 = vpop.xlane.xlu0 %1762
        %1764 = vadd.xlane.f32.xlu0 %v1639
        %v1765 = vpop.xlane.xlu0 %1764
        %1766 = vadd.xlane.f32.xlu0 %v1640
        %v1767 = vpop.xlane.xlu0 %1766
        %1768 = vadd.xlane.f32.xlu0 %v1641
        %v1769 = vpop.xlane.xlu0 %1768
        %v1770 = vrcp.pop %v1643
        %v1771 = vrcp.pop %v1645
        %v1772 = vrcp.pop %v1647
        %v1773 = vrcp.pop %v1649
        %v1774 = vrcp.pop %v1651
        %v1775 = vrcp.pop %v1653
        %v1776 = vrcp.pop %v1655
        %v1777 = vrcp.pop %v1657
        %v1778 = vrcp.pop %v1659
        %v1779 = vrcp.pop %v1661
        %v1780 = vrcp.pop %v1663
        %v1781 = vrcp.pop %v1665
        %v1782 = vrcp.pop %v1667
        %v1783 = vrcp.pop %v1669
        %v1784 = vrcp.pop %v1671
        %v1785 = vrcp.pop %v1673
        %v1786 = vrcp.pop %v1675
        %v1787 = vrcp.pop %v1677
        %v1788 = vrcp.pop %v1679
        %v1789 = vrcp.pop %v1681
        %v1790 = vrcp.pop %v1683
        %v1791 = vrcp.pop %v1685
        %v1792 = vrcp.pop %v1687
        %v1793 = vrcp.pop %v1689
        %v1794 = vrcp.pop %v1691
        %v1795 = vrcp.pop %v1693
        %v1796 = vrcp.pop %v1695
        %v1797 = vrcp.pop %v1697
        %v1798 = vrcp.pop %v1699
        %v1799 = vrcp.pop %v1701
        %v1800 = vrcp.pop %v1703
        %v1801 = vrcp.pop %v1705
        %v1802 = vrcp.pop %v1707
        %v1803 = vrcp.pop %v1709
        %v1804 = vrcp.pop %v1711
        %v1805 = vrcp.pop %v1713
        %v1806 = vrcp.pop %v1715
        %v1807 = vrcp.pop %v1717
        %v1808 = vrcp.pop %v1719
        %v1809 = vrcp.pop %v1721
        %v1810 = vrcp.pop %v1723
        %v1811 = vrcp.pop %v1725
        %v1812 = vrcp.pop %v1727
        %v1813 = vrcp.pop %v1729
        %v1814 = vrcp.pop %v1731
        %v1815 = vrcp.pop %v1733
        %v1816 = vrcp.pop %v1735
        %v1817 = vrcp.pop %v1737
        %v1818 = vrcp.pop %v1739
        %v1819 = vrcp.pop %v1741
        %v1820 = vrcp.pop %v1743
        %v1821 = vrcp.pop %v1745
        %v1822 = vrcp.pop %v1747
        %v1823 = vrcp.pop %v1749
        %v1824 = vrcp.pop %v1751
        %v1825 = vrcp.pop %v1753
        %v1826 = vrcp.pop %v1755
        %v1827 = vrcp.pop %v1757
        %v1828 = vrcp.pop %v1759
        %v1829 = vrcp.pop %v1761
        %v1830 = vrcp.pop %v1763
        %v1831 = vrcp.pop %v1765
        %v1832 = vrcp.pop %v1767
        %v1833 = vrcp.pop %v1769
        %v1834 = vmul.f32 %v202, %v1770
        %v1835 = vmul.f32 %v203, %v1771
        %v1836 = vmul.f32 %v204, %v1772
        %v1837 = vmul.f32 %v205, %v1773
        %v1838 = vmul.f32 %v206, %v1774
        %v1839 = vmul.f32 %v207, %v1775
        %v1840 = vmul.f32 %v208, %v1776
        %v1841 = vmul.f32 %v209, %v1777
        %v1842 = vmul.f32 %v210, %v1778
        %v1843 = vmul.f32 %v211, %v1779
        %v1844 = vmul.f32 %v212, %v1780
        %v1845 = vmul.f32 %v213, %v1781
        %v1846 = vmul.f32 %v214, %v1782
        %v1847 = vmul.f32 %v215, %v1783
        %v1848 = vmul.f32 %v216, %v1784
        %v1849 = vmul.f32 %v217, %v1785
        %v1850 = vmul.f32 %v218, %v1786
        %v1851 = vmul.f32 %v219, %v1787
        %v1852 = vmul.f32 %v220, %v1788
        %v1853 = vmul.f32 %v221, %v1789
        %v1854 = vmul.f32 %v222, %v1790
        %v1855 = vmul.f32 %v223, %v1791
        %v1856 = vmul.f32 %v224, %v1792
        %v1857 = vmul.f32 %v225, %v1793
        %v1858 = vmul.f32 %v226, %v1794
        %v1859 = vmul.f32 %v227, %v1795
        %v1860 = vmul.f32 %v228, %v1796
        %v1861 = vmul.f32 %v229, %v1797
        %v1862 = vmul.f32 %v230, %v1798
        %v1863 = vmul.f32 %v231, %v1799
        %v1864 = vmul.f32 %v232, %v1800
        %v1865 = vmul.f32 %v233, %v1801
        %v1866 = vmul.f32 %v234, %v1802
        %v1867 = vmul.f32 %v235, %v1803
        %v1868 = vmul.f32 %v236, %v1804
        %v1869 = vmul.f32 %v237, %v1805
        %v1870 = vmul.f32 %v238, %v1806
        %v1871 = vmul.f32 %v239, %v1807
        %v1872 = vmul.f32 %v240, %v1808
        %v1873 = vmul.f32 %v241, %v1809
        %v1874 = vmul.f32 %v242, %v1810
        %v1875 = vmul.f32 %v243, %v1811
        %v1876 = vmul.f32 %v244, %v1812
        %v1877 = vmul.f32 %v245, %v1813
        %v1878 = vmul.f32 %v246, %v1814
        %v1879 = vmul.f32 %v247, %v1815
        %v1880 = vmul.f32 %v248, %v1816
        %v1881 = vmul.f32 %v249, %v1817
        %v1882 = vmul.f32 %v250, %v1818
        %v1883 = vmul.f32 %v251, %v1819
        %v1884 = vmul.f32 %v252, %v1820
        %v1885 = vmul.f32 %v253, %v1821
        %v1886 = vmul.f32 %v254, %v1822
        %v1887 = vmul.f32 %v255, %v1823
        %v1888 = vmul.f32 %v256, %v1824
        %v1889 = vmul.f32 %v257, %v1825
        %v1890 = vmul.f32 %v258, %v1826
        %v1891 = vmul.f32 %v259, %v1827
        %v1892 = vmul.f32 %v260, %v1828
        %v1893 = vmul.f32 %v261, %v1829
        %v1894 = vmul.f32 %v262, %v1830
        %v1895 = vmul.f32 %v263, %v1831
        %v1896 = vmul.f32 %v264, %v1832
        %v1897 = vmul.f32 %v265, %v1833
        %v1898 = vadd.f32 %v1834, %v1835
        %v1899 = vadd.f32 %v1898, %v1836
        %v1900 = vadd.f32 %v1899, %v1837
        %v1901 = vadd.f32 %v1900, %v1838
        %v1902 = vadd.f32 %v1901, %v1839
        %v1903 = vadd.f32 %v1902, %v1840
        %v1904 = vadd.f32 %v1903, %v1841
        %v1905 = vadd.f32 %v1904, %v1842
        %v1906 = vadd.f32 %v1905, %v1843
        %v1907 = vadd.f32 %v1906, %v1844
        %v1908 = vadd.f32 %v1907, %v1845
        %v1909 = vadd.f32 %v1908, %v1846
        %v1910 = vadd.f32 %v1909, %v1847
        %v1911 = vadd.f32 %v1910, %v1848
        %v1912 = vadd.f32 %v1911, %v1849
        %v1913 = vrot.slane %v1912, 4
        %v1914 = vadd.f32 %v1912, %v1913
        %v1915 = vrot.slane %v1914, 2
        %v1916 = vadd.f32 %v1914, %v1915
        %v1917 = vrot.slane %v1916, 1
        %v1918 = vadd.f32 %v1916, %v1917
        %v1919 = vadd.f32 %v1850, %v1851
        %v1920 = vadd.f32 %v1919, %v1852
        %v1921 = vadd.f32 %v1920, %v1853
        %v1922 = vadd.f32 %v1921, %v1854
        %v1923 = vadd.f32 %v1922, %v1855
        %v1924 = vadd.f32 %v1923, %v1856
        %v1925 = vadd.f32 %v1924, %v1857
        %v1926 = vadd.f32 %v1925, %v1858
        %v1927 = vadd.f32 %v1926, %v1859
        %v1928 = vadd.f32 %v1927, %v1860
        %v1929 = vadd.f32 %v1928, %v1861
        %v1930 = vadd.f32 %v1929, %v1862
        %v1931 = vadd.f32 %v1930, %v1863
        %v1932 = vadd.f32 %v1931, %v1864
        %v1933 = vadd.f32 %v1932, %v1865
        %v1934 = vrot.slane %v1933, 4
        %v1935 = vadd.f32 %v1933, %v1934
        %v1936 = vrot.slane %v1935, 2
        %v1937 = vadd.f32 %v1935, %v1936
        %v1938 = vrot.slane %v1937, 1
        %v1939 = vadd.f32 %v1937, %v1938
        %v1940 = vadd.f32 %v1866, %v1867
        %v1941 = vadd.f32 %v1940, %v1868
        %v1942 = vadd.f32 %v1941, %v1869
        %v1943 = vadd.f32 %v1942, %v1870
        %v1944 = vadd.f32 %v1943, %v1871
        %v1945 = vadd.f32 %v1944, %v1872
        %v1946 = vadd.f32 %v1945, %v1873
        %v1947 = vadd.f32 %v1946, %v1874
        %v1948 = vadd.f32 %v1947, %v1875
        %v1949 = vadd.f32 %v1948, %v1876
        %v1950 = vadd.f32 %v1949, %v1877
        %v1951 = vadd.f32 %v1950, %v1878
        %v1952 = vadd.f32 %v1951, %v1879
        %v1953 = vadd.f32 %v1952, %v1880
        %v1954 = vadd.f32 %v1953, %v1881
        %v1955 = vrot.slane %v1954, 4
        %v1956 = vadd.f32 %v1954, %v1955
        %v1957 = vrot.slane %v1956, 2
        %v1958 = vadd.f32 %v1956, %v1957
        %v1959 = vrot.slane %v1958, 1
        %v1960 = vadd.f32 %v1958, %v1959
        %v1961 = vadd.f32 %v1882, %v1883
        %v1962 = vadd.f32 %v1961, %v1884
        %v1963 = vadd.f32 %v1962, %v1885
        %v1964 = vadd.f32 %v1963, %v1886
        %v1965 = vadd.f32 %v1964, %v1887
        %v1966 = vadd.f32 %v1965, %v1888
        %v1967 = vadd.f32 %v1966, %v1889
        %v1968 = vadd.f32 %v1967, %v1890
        %v1969 = vadd.f32 %v1968, %v1891
        %v1970 = vadd.f32 %v1969, %v1892
        %v1971 = vadd.f32 %v1970, %v1893
        %v1972 = vadd.f32 %v1971, %v1894
        %v1973 = vadd.f32 %v1972, %v1895
        %v1974 = vadd.f32 %v1973, %v1896
        %v1975 = vadd.f32 %v1974, %v1897
        %v1976 = vrot.slane %v1975, 4
        %v1977 = vadd.f32 %v1975, %v1976
        %v1978 = vrot.slane %v1977, 2
        %v1979 = vadd.f32 %v1977, %v1978
        %v1980 = vrot.slane %v1979, 1
        %v1981 = vadd.f32 %v1979, %v1980
        %v1982 = vrcp.pop %v1918
        %v1983 = vrcp.pop %v1939
        %v1984 = vrcp.pop %v1960
        %v1985 = vrcp.pop %v1981
        %v1986 = vmul.f32 %v202, %v1982
        %v1987 = vmul.f32 %v203, %v1982
        %v1988 = vmul.f32 %v204, %v1982
        %v1989 = vmul.f32 %v205, %v1982
        %v1990 = vmul.f32 %v206, %v1982
        %v1991 = vmul.f32 %v207, %v1982
        %v1992 = vmul.f32 %v208, %v1982
        %v1993 = vmul.f32 %v209, %v1982
        %v1994 = vmul.f32 %v210, %v1982
        %v1995 = vmul.f32 %v211, %v1982
        %v1996 = vmul.f32 %v212, %v1982
        %v1997 = vmul.f32 %v213, %v1982
        %v1998 = vmul.f32 %v214, %v1982
        %v1999 = vmul.f32 %v215, %v1982
        %v2000 = vmul.f32 %v216, %v1982
        %v2001 = vmul.f32 %v217, %v1982
        %v2002 = vmul.f32 %v218, %v1983
        %v2003 = vmul.f32 %v219, %v1983
        %v2004 = vmul.f32 %v220, %v1983
        %v2005 = vmul.f32 %v221, %v1983
        %v2006 = vmul.f32 %v222, %v1983
        %v2007 = vmul.f32 %v223, %v1983
        %v2008 = vmul.f32 %v224, %v1983
        %v2009 = vmul.f32 %v225, %v1983
        %v2010 = vmul.f32 %v226, %v1983
        %v2011 = vmul.f32 %v227, %v1983
        %v2012 = vmul.f32 %v228, %v1983
        %v2013 = vmul.f32 %v229, %v1983
        %v2014 = vmul.f32 %v230, %v1983
        %v2015 = vmul.f32 %v231, %v1983
        %v2016 = vmul.f32 %v232, %v1983
        %v2017 = vmul.f32 %v233, %v1983
        %v2018 = vmul.f32 %v234, %v1984
        %v2019 = vmul.f32 %v235, %v1984
        %v2020 = vmul.f32 %v236, %v1984
        %v2021 = vmul.f32 %v237, %v1984
        %v2022 = vmul.f32 %v238, %v1984
        %v2023 = vmul.f32 %v239, %v1984
        %v2024 = vmul.f32 %v240, %v1984
        %v2025 = vmul.f32 %v241, %v1984
        %v2026 = vmul.f32 %v242, %v1984
        %v2027 = vmul.f32 %v243, %v1984
        %v2028 = vmul.f32 %v244, %v1984
        %v2029 = vmul.f32 %v245, %v1984
        %v2030 = vmul.f32 %v246, %v1984
        %v2031 = vmul.f32 %v247, %v1984
        %v2032 = vmul.f32 %v248, %v1984
        %v2033 = vmul.f32 %v249, %v1984
        %v2034 = vmul.f32 %v250, %v1985
        %v2035 = vmul.f32 %v251, %v1985
        %v2036 = vmul.f32 %v252, %v1985
        %v2037 = vmul.f32 %v253, %v1985
        %v2038 = vmul.f32 %v254, %v1985
        %v2039 = vmul.f32 %v255, %v1985
        %v2040 = vmul.f32 %v256, %v1985
        %v2041 = vmul.f32 %v257, %v1985
        %v2042 = vmul.f32 %v258, %v1985
        %v2043 = vmul.f32 %v259, %v1985
        %v2044 = vmul.f32 %v260, %v1985
        %v2045 = vmul.f32 %v261, %v1985
        %v2046 = vmul.f32 %v262, %v1985
        %v2047 = vmul.f32 %v263, %v1985
        %v2048 = vmul.f32 %v264, %v1985
        %v2049 = vmul.f32 %v265, %v1985
        %2050 = vadd.xlane.f32.xlu0 %v1986
        %v2051 = vpop.xlane.xlu0 %2050
        %2052 = vadd.xlane.f32.xlu0 %v1987
        %v2053 = vpop.xlane.xlu0 %2052
        %2054 = vadd.xlane.f32.xlu0 %v1988
        %v2055 = vpop.xlane.xlu0 %2054
        %2056 = vadd.xlane.f32.xlu0 %v1989
        %v2057 = vpop.xlane.xlu0 %2056
        %2058 = vadd.xlane.f32.xlu0 %v1990
        %v2059 = vpop.xlane.xlu0 %2058
        %2060 = vadd.xlane.f32.xlu0 %v1991
        %v2061 = vpop.xlane.xlu0 %2060
        %2062 = vadd.xlane.f32.xlu0 %v1992
        %v2063 = vpop.xlane.xlu0 %2062
        %2064 = vadd.xlane.f32.xlu0 %v1993
        %v2065 = vpop.xlane.xlu0 %2064
        %2066 = vadd.xlane.f32.xlu0 %v1994
        %v2067 = vpop.xlane.xlu0 %2066
        %2068 = vadd.xlane.f32.xlu0 %v1995
        %v2069 = vpop.xlane.xlu0 %2068
        %2070 = vadd.xlane.f32.xlu0 %v1996
        %v2071 = vpop.xlane.xlu0 %2070
        %2072 = vadd.xlane.f32.xlu0 %v1997
        %v2073 = vpop.xlane.xlu0 %2072
        %2074 = vadd.xlane.f32.xlu0 %v1998
        %v2075 = vpop.xlane.xlu0 %2074
        %2076 = vadd.xlane.f32.xlu0 %v1999
        %v2077 = vpop.xlane.xlu0 %2076
        %2078 = vadd.xlane.f32.xlu0 %v2000
        %v2079 = vpop.xlane.xlu0 %2078
        %2080 = vadd.xlane.f32.xlu0 %v2001
        %v2081 = vpop.xlane.xlu0 %2080
        %2082 = vadd.xlane.f32.xlu0 %v2002
        %v2083 = vpop.xlane.xlu0 %2082
        %2084 = vadd.xlane.f32.xlu0 %v2003
        %v2085 = vpop.xlane.xlu0 %2084
        %2086 = vadd.xlane.f32.xlu0 %v2004
        %v2087 = vpop.xlane.xlu0 %2086
        %2088 = vadd.xlane.f32.xlu0 %v2005
        %v2089 = vpop.xlane.xlu0 %2088
        %2090 = vadd.xlane.f32.xlu0 %v2006
        %v2091 = vpop.xlane.xlu0 %2090
        %2092 = vadd.xlane.f32.xlu0 %v2007
        %v2093 = vpop.xlane.xlu0 %2092
        %2094 = vadd.xlane.f32.xlu0 %v2008
        %v2095 = vpop.xlane.xlu0 %2094
        %2096 = vadd.xlane.f32.xlu0 %v2009
        %v2097 = vpop.xlane.xlu0 %2096
        %2098 = vadd.xlane.f32.xlu0 %v2010
        %v2099 = vpop.xlane.xlu0 %2098
        %2100 = vadd.xlane.f32.xlu0 %v2011
        %v2101 = vpop.xlane.xlu0 %2100
        %2102 = vadd.xlane.f32.xlu0 %v2012
        %v2103 = vpop.xlane.xlu0 %2102
        %2104 = vadd.xlane.f32.xlu0 %v2013
        %v2105 = vpop.xlane.xlu0 %2104
        %2106 = vadd.xlane.f32.xlu0 %v2014
        %v2107 = vpop.xlane.xlu0 %2106
        %2108 = vadd.xlane.f32.xlu0 %v2015
        %v2109 = vpop.xlane.xlu0 %2108
        %2110 = vadd.xlane.f32.xlu0 %v2016
        %v2111 = vpop.xlane.xlu0 %2110
        %2112 = vadd.xlane.f32.xlu0 %v2017
        %v2113 = vpop.xlane.xlu0 %2112
        %2114 = vadd.xlane.f32.xlu0 %v2018
        %v2115 = vpop.xlane.xlu0 %2114
        %2116 = vadd.xlane.f32.xlu0 %v2019
        %v2117 = vpop.xlane.xlu0 %2116
        %2118 = vadd.xlane.f32.xlu0 %v2020
        %v2119 = vpop.xlane.xlu0 %2118
        %2120 = vadd.xlane.f32.xlu0 %v2021
        %v2121 = vpop.xlane.xlu0 %2120
        %2122 = vadd.xlane.f32.xlu0 %v2022
        %v2123 = vpop.xlane.xlu0 %2122
        %2124 = vadd.xlane.f32.xlu0 %v2023
        %v2125 = vpop.xlane.xlu0 %2124
        %2126 = vadd.xlane.f32.xlu0 %v2024
        %v2127 = vpop.xlane.xlu0 %2126
        %2128 = vadd.xlane.f32.xlu0 %v2025
        %v2129 = vpop.xlane.xlu0 %2128
        %2130 = vadd.xlane.f32.xlu0 %v2026
        %v2131 = vpop.xlane.xlu0 %2130
        %2132 = vadd.xlane.f32.xlu0 %v2027
        %v2133 = vpop.xlane.xlu0 %2132
        %2134 = vadd.xlane.f32.xlu0 %v2028
        %v2135 = vpop.xlane.xlu0 %2134
        %2136 = vadd.xlane.f32.xlu0 %v2029
        %v2137 = vpop.xlane.xlu0 %2136
        %2138 = vadd.xlane.f32.xlu0 %v2030
        %v2139 = vpop.xlane.xlu0 %2138
        %2140 = vadd.xlane.f32.xlu0 %v2031
        %v2141 = vpop.xlane.xlu0 %2140
        %2142 = vadd.xlane.f32.xlu0 %v2032
        %v2143 = vpop.xlane.xlu0 %2142
        %2144 = vadd.xlane.f32.xlu0 %v2033
        %v2145 = vpop.xlane.xlu0 %2144
        %2146 = vadd.xlane.f32.xlu0 %v2034
        %v2147 = vpop.xlane.xlu0 %2146
        %2148 = vadd.xlane.f32.xlu0 %v2035
        %v2149 = vpop.xlane.xlu0 %2148
        %2150 = vadd.xlane.f32.xlu0 %v2036
        %v2151 = vpop.xlane.xlu0 %2150
        %2152 = vadd.xlane.f32.xlu0 %v2037
        %v2153 = vpop.xlane.xlu0 %2152
        %2154 = vadd.xlane.f32.xlu0 %v2038
        %v2155 = vpop.xlane.xlu0 %2154
        %2156 = vadd.xlane.f32.xlu0 %v2039
        %v2157 = vpop.xlane.xlu0 %2156
        %2158 = vadd.xlane.f32.xlu0 %v2040
        %v2159 = vpop.xlane.xlu0 %2158
        %2160 = vadd.xlane.f32.xlu0 %v2041
        %v2161 = vpop.xlane.xlu0 %2160
        %2162 = vadd.xlane.f32.xlu0 %v2042
        %v2163 = vpop.xlane.xlu0 %2162
        %2164 = vadd.xlane.f32.xlu0 %v2043
        %v2165 = vpop.xlane.xlu0 %2164
        %2166 = vadd.xlane.f32.xlu0 %v2044
        %v2167 = vpop.xlane.xlu0 %2166
        %2168 = vadd.xlane.f32.xlu0 %v2045
        %v2169 = vpop.xlane.xlu0 %2168
        %2170 = vadd.xlane.f32.xlu0 %v2046
        %v2171 = vpop.xlane.xlu0 %2170
        %2172 = vadd.xlane.f32.xlu0 %v2047
        %v2173 = vpop.xlane.xlu0 %2172
        %2174 = vadd.xlane.f32.xlu0 %v2048
        %v2175 = vpop.xlane.xlu0 %2174
        %2176 = vadd.xlane.f32.xlu0 %v2049
        %v2177 = vpop.xlane.xlu0 %2176
        %v2178 = vrcp.pop %v2051
        %v2179 = vrcp.pop %v2053
        %v2180 = vrcp.pop %v2055
        %v2181 = vrcp.pop %v2057
        %v2182 = vrcp.pop %v2059
        %v2183 = vrcp.pop %v2061
        %v2184 = vrcp.pop %v2063
        %v2185 = vrcp.pop %v2065
        %v2186 = vrcp.pop %v2067
        %v2187 = vrcp.pop %v2069
        %v2188 = vrcp.pop %v2071
        %v2189 = vrcp.pop %v2073
        %v2190 = vrcp.pop %v2075
        %v2191 = vrcp.pop %v2077
        %v2192 = vrcp.pop %v2079
        %v2193 = vrcp.pop %v2081
        %v2194 = vrcp.pop %v2083
        %v2195 = vrcp.pop %v2085
        %v2196 = vrcp.pop %v2087
        %v2197 = vrcp.pop %v2089
        %v2198 = vrcp.pop %v2091
        %v2199 = vrcp.pop %v2093
        %v2200 = vrcp.pop %v2095
        %v2201 = vrcp.pop %v2097
        %v2202 = vrcp.pop %v2099
        %v2203 = vrcp.pop %v2101
        %v2204 = vrcp.pop %v2103
        %v2205 = vrcp.pop %v2105
        %v2206 = vrcp.pop %v2107
        %v2207 = vrcp.pop %v2109
        %v2208 = vrcp.pop %v2111
        %v2209 = vrcp.pop %v2113
        %v2210 = vrcp.pop %v2115
        %v2211 = vrcp.pop %v2117
        %v2212 = vrcp.pop %v2119
        %v2213 = vrcp.pop %v2121
        %v2214 = vrcp.pop %v2123
        %v2215 = vrcp.pop %v2125
        %v2216 = vrcp.pop %v2127
        %v2217 = vrcp.pop %v2129
        %v2218 = vrcp.pop %v2131
        %v2219 = vrcp.pop %v2133
        %v2220 = vrcp.pop %v2135
        %v2221 = vrcp.pop %v2137
        %v2222 = vrcp.pop %v2139
        %v2223 = vrcp.pop %v2141
        %v2224 = vrcp.pop %v2143
        %v2225 = vrcp.pop %v2145
        %v2226 = vrcp.pop %v2147
        %v2227 = vrcp.pop %v2149
        %v2228 = vrcp.pop %v2151
        %v2229 = vrcp.pop %v2153
        %v2230 = vrcp.pop %v2155
        %v2231 = vrcp.pop %v2157
        %v2232 = vrcp.pop %v2159
        %v2233 = vrcp.pop %v2161
        %v2234 = vrcp.pop %v2163
        %v2235 = vrcp.pop %v2165
        %v2236 = vrcp.pop %v2167
        %v2237 = vrcp.pop %v2169
        %v2238 = vrcp.pop %v2171
        %v2239 = vrcp.pop %v2173
        %v2240 = vrcp.pop %v2175
        %v2241 = vrcp.pop %v2177
        %v2242 = vmul.f32 %v202, %v2178
        %v2243 = vmul.f32 %v203, %v2179
        %v2244 = vmul.f32 %v204, %v2180
        %v2245 = vmul.f32 %v205, %v2181
        %v2246 = vmul.f32 %v206, %v2182
        %v2247 = vmul.f32 %v207, %v2183
        %v2248 = vmul.f32 %v208, %v2184
        %v2249 = vmul.f32 %v209, %v2185
        %v2250 = vmul.f32 %v210, %v2186
        %v2251 = vmul.f32 %v211, %v2187
        %v2252 = vmul.f32 %v212, %v2188
        %v2253 = vmul.f32 %v213, %v2189
        %v2254 = vmul.f32 %v214, %v2190
        %v2255 = vmul.f32 %v215, %v2191
        %v2256 = vmul.f32 %v216, %v2192
        %v2257 = vmul.f32 %v217, %v2193
        %v2258 = vmul.f32 %v218, %v2194
        %v2259 = vmul.f32 %v219, %v2195
        %v2260 = vmul.f32 %v220, %v2196
        %v2261 = vmul.f32 %v221, %v2197
        %v2262 = vmul.f32 %v222, %v2198
        %v2263 = vmul.f32 %v223, %v2199
        %v2264 = vmul.f32 %v224, %v2200
        %v2265 = vmul.f32 %v225, %v2201
        %v2266 = vmul.f32 %v226, %v2202
        %v2267 = vmul.f32 %v227, %v2203
        %v2268 = vmul.f32 %v228, %v2204
        %v2269 = vmul.f32 %v229, %v2205
        %v2270 = vmul.f32 %v230, %v2206
        %v2271 = vmul.f32 %v231, %v2207
        %v2272 = vmul.f32 %v232, %v2208
        %v2273 = vmul.f32 %v233, %v2209
        %v2274 = vmul.f32 %v234, %v2210
        %v2275 = vmul.f32 %v235, %v2211
        %v2276 = vmul.f32 %v236, %v2212
        %v2277 = vmul.f32 %v237, %v2213
        %v2278 = vmul.f32 %v238, %v2214
        %v2279 = vmul.f32 %v239, %v2215
        %v2280 = vmul.f32 %v240, %v2216
        %v2281 = vmul.f32 %v241, %v2217
        %v2282 = vmul.f32 %v242, %v2218
        %v2283 = vmul.f32 %v243, %v2219
        %v2284 = vmul.f32 %v244, %v2220
        %v2285 = vmul.f32 %v245, %v2221
        %v2286 = vmul.f32 %v246, %v2222
        %v2287 = vmul.f32 %v247, %v2223
        %v2288 = vmul.f32 %v248, %v2224
        %v2289 = vmul.f32 %v249, %v2225
        %v2290 = vmul.f32 %v250, %v2226
        %v2291 = vmul.f32 %v251, %v2227
        %v2292 = vmul.f32 %v252, %v2228
        %v2293 = vmul.f32 %v253, %v2229
        %v2294 = vmul.f32 %v254, %v2230
        %v2295 = vmul.f32 %v255, %v2231
        %v2296 = vmul.f32 %v256, %v2232
        %v2297 = vmul.f32 %v257, %v2233
        %v2298 = vmul.f32 %v258, %v2234
        %v2299 = vmul.f32 %v259, %v2235
        %v2300 = vmul.f32 %v260, %v2236
        %v2301 = vmul.f32 %v261, %v2237
        %v2302 = vmul.f32 %v262, %v2238
        %v2303 = vmul.f32 %v263, %v2239
        %v2304 = vmul.f32 %v264, %v2240
        %v2305 = vmul.f32 %v265, %v2241
        %v2306 = vmul.f32 %v2242, %v1982
        %v2307 = vmul.f32 %v2243, %v1982
        %v2308 = vmul.f32 %v2244, %v1982
        %v2309 = vmul.f32 %v2245, %v1982
        %v2310 = vmul.f32 %v2246, %v1982
        %v2311 = vmul.f32 %v2247, %v1982
        %v2312 = vmul.f32 %v2248, %v1982
        %v2313 = vmul.f32 %v2249, %v1982
        %v2314 = vmul.f32 %v2250, %v1982
        %v2315 = vmul.f32 %v2251, %v1982
        %v2316 = vmul.f32 %v2252, %v1982
        %v2317 = vmul.f32 %v2253, %v1982
        %v2318 = vmul.f32 %v2254, %v1982
        %v2319 = vmul.f32 %v2255, %v1982
        %v2320 = vmul.f32 %v2256, %v1982
        %v2321 = vmul.f32 %v2257, %v1982
        %v2322 = vmul.f32 %v2258, %v1983
        %v2323 = vmul.f32 %v2259, %v1983
        %v2324 = vmul.f32 %v2260, %v1983
        %v2325 = vmul.f32 %v2261, %v1983
        %v2326 = vmul.f32 %v2262, %v1983
        %v2327 = vmul.f32 %v2263, %v1983
        %v2328 = vmul.f32 %v2264, %v1983
        %v2329 = vmul.f32 %v2265, %v1983
        %v2330 = vmul.f32 %v2266, %v1983
        %v2331 = vmul.f32 %v2267, %v1983
        %v2332 = vmul.f32 %v2268, %v1983
        %v2333 = vmul.f32 %v2269, %v1983
        %v2334 = vmul.f32 %v2270, %v1983
        %v2335 = vmul.f32 %v2271, %v1983
        %v2336 = vmul.f32 %v2272, %v1983
        %v2337 = vmul.f32 %v2273, %v1983
        %v2338 = vmul.f32 %v2274, %v1984
        %v2339 = vmul.f32 %v2275, %v1984
        %v2340 = vmul.f32 %v2276, %v1984
        %v2341 = vmul.f32 %v2277, %v1984
        %v2342 = vmul.f32 %v2278, %v1984
        %v2343 = vmul.f32 %v2279, %v1984
        %v2344 = vmul.f32 %v2280, %v1984
        %v2345 = vmul.f32 %v2281, %v1984
        %v2346 = vmul.f32 %v2282, %v1984
        %v2347 = vmul.f32 %v2283, %v1984
        %v2348 = vmul.f32 %v2284, %v1984
        %v2349 = vmul.f32 %v2285, %v1984
        %v2350 = vmul.f32 %v2286, %v1984
        %v2351 = vmul.f32 %v2287, %v1984
        %v2352 = vmul.f32 %v2288, %v1984
        %v2353 = vmul.f32 %v2289, %v1984
        %v2354 = vmul.f32 %v2290, %v1985
        %v2355 = vmul.f32 %v2291, %v1985
        %v2356 = vmul.f32 %v2292, %v1985
        %v2357 = vmul.f32 %v2293, %v1985
        %v2358 = vmul.f32 %v2294, %v1985
        %v2359 = vmul.f32 %v2295, %v1985
        %v2360 = vmul.f32 %v2296, %v1985
        %v2361 = vmul.f32 %v2297, %v1985
        %v2362 = vmul.f32 %v2298, %v1985
        %v2363 = vmul.f32 %v2299, %v1985
        %v2364 = vmul.f32 %v2300, %v1985
        %v2365 = vmul.f32 %v2301, %v1985
        %v2366 = vmul.f32 %v2302, %v1985
        %v2367 = vmul.f32 %v2303, %v1985
        %v2368 = vmul.f32 %v2304, %v1985
        %v2369 = vmul.f32 %v2305, %v1985
        %2370 = vst [vmem:[%s135] sm:$0xff] %v2306
        %2371 = vst [vmem:[%s135 + $0x8] sm:$0xff] %v2307
        %2372 = vst [vmem:[%s135 + $0x10] sm:$0xff] %v2308
        %2373 = vst [vmem:[%s135 + $0x18] sm:$0xff] %v2309
        %2374 = vst [vmem:[%s135 + $0x20] sm:$0xff] %v2310
        %2375 = vst [vmem:[%s135 + $0x28] sm:$0xff] %v2311
        %2376 = vst [vmem:[%s135 + $0x30] sm:$0xff] %v2312
        %2377 = vst [vmem:[%s135 + $0x38] sm:$0xff] %v2313
        %2378 = vst [vmem:[%s135 + $0x40] sm:$0xff] %v2314
        %2379 = vst [vmem:[%s135 + $0x48] sm:$0xff] %v2315
        %2380 = vst [vmem:[%s135 + $0x50] sm:$0xff] %v2316
        %2381 = vst [vmem:[%s135 + $0x58] sm:$0xff] %v2317
        %2382 = vst [vmem:[%s135 + $0x60] sm:$0xff] %v2318
        %2383 = vst [vmem:[%s135 + $0x68] sm:$0xff] %v2319
        %2384 = vst [vmem:[%s135 + $0x70] sm:$0xff] %v2320
        %2385 = vst [vmem:[%s135 + $0x78] sm:$0xff] %v2321
        %2386 = vst [vmem:[%s135 + $0x80] sm:$0xff] %v2322
        %2387 = vst [vmem:[%s135 + $0x88] sm:$0xff] %v2323
        %2388 = vst [vmem:[%s135 + $0x90] sm:$0xff] %v2324
        %2389 = vst [vmem:[%s135 + $0x98] sm:$0xff] %v2325
        %2390 = vst [vmem:[%s135 + $0xa0] sm:$0xff] %v2326
        %2391 = vst [vmem:[%s135 + $0xa8] sm:$0xff] %v2327
        %2392 = vst [vmem:[%s135 + $0xb0] sm:$0xff] %v2328
        %2393 = vst [vmem:[%s135 + $0xb8] sm:$0xff] %v2329
        %2394 = vst [vmem:[%s135 + $0xc0] sm:$0xff] %v2330
        %2395 = vst [vmem:[%s135 + $0xc8] sm:$0xff] %v2331
        %2396 = vst [vmem:[%s135 + $0xd0] sm:$0xff] %v2332
        %2397 = vst [vmem:[%s135 + $0xd8] sm:$0xff] %v2333
        %2398 = vst [vmem:[%s135 + $0xe0] sm:$0xff] %v2334
        %2399 = vst [vmem:[%s135 + $0xe8] sm:$0xff] %v2335
        %2400 = vst [vmem:[%s135 + $0xf0] sm:$0xff] %v2336
        %2401 = vst [vmem:[%s135 + $0xf8] sm:$0xff] %v2337
        %2402 = vst [vmem:[%s135 + $0x100] sm:$0xff] %v2338
        %2403 = vst [vmem:[%s135 + $0x108] sm:$0xff] %v2339
        %2404 = vst [vmem:[%s135 + $0x110] sm:$0xff] %v2340
        %2405 = vst [vmem:[%s135 + $0x118] sm:$0xff] %v2341
        %2406 = vst [vmem:[%s135 + $0x120] sm:$0xff] %v2342
        %2407 = vst [vmem:[%s135 + $0x128] sm:$0xff] %v2343
        %2408 = vst [vmem:[%s135 + $0x130] sm:$0xff] %v2344
        %2409 = vst [vmem:[%s135 + $0x138] sm:$0xff] %v2345
        %2410 = vst [vmem:[%s135 + $0x140] sm:$0xff] %v2346
        %2411 = vst [vmem:[%s135 + $0x148] sm:$0xff] %v2347
        %2412 = vst [vmem:[%s135 + $0x150] sm:$0xff] %v2348
        %2413 = vst [vmem:[%s135 + $0x158] sm:$0xff] %v2349
        %2414 = vst [vmem:[%s135 + $0x160] sm:$0xff] %v2350
        %2415 = vst [vmem:[%s135 + $0x168] sm:$0xff] %v2351
        %2416 = vst [vmem:[%s135 + $0x170] sm:$0xff] %v2352
        %2417 = vst [vmem:[%s135 + $0x178] sm:$0xff] %v2353
        %2418 = vst [vmem:[%s135 + $0x180] sm:$0xff] %v2354
        %2419 = vst [vmem:[%s135 + $0x188] sm:$0xff] %v2355
        %2420 = vst [vmem:[%s135 + $0x190] sm:$0xff] %v2356
        %2421 = vst [vmem:[%s135 + $0x198] sm:$0xff] %v2357
        %2422 = vst [vmem:[%s135 + $0x1a0] sm:$0xff] %v2358
        %2423 = vst [vmem:[%s135 + $0x1a8] sm:$0xff] %v2359
        %2424 = vst [vmem:[%s135 + $0x1b0] sm:$0xff] %v2360
        %2425 = vst [vmem:[%s135 + $0x1b8] sm:$0xff] %v2361
        %2426 = vst [vmem:[%s135 + $0x1c0] sm:$0xff] %v2362
        %2427 = vst [vmem:[%s135 + $0x1c8] sm:$0xff] %v2363
        %2428 = vst [vmem:[%s135 + $0x1d0] sm:$0xff] %v2364
        %2429 = vst [vmem:[%s135 + $0x1d8] sm:$0xff] %v2365
        %2430 = vst [vmem:[%s135 + $0x1e0] sm:$0xff] %v2366
        %2431 = vst [vmem:[%s135 + $0x1e8] sm:$0xff] %v2367
        %2432 = vst [vmem:[%s135 + $0x1f0] sm:$0xff] %v2368
        %2433 = vst [vmem:[%s135 + $0x1f8] sm:$0xff] %v2369
        %s2434 = sand.u32 %s52, 1
        %s2435 = scalar_lea.sflag [#allocation4], %s2434
        %s2436 = sand.u32 %s52, 1
        %s2437 = smul.addr %s2436, 512
        %s2438 = scalar_lea.vmem [#allocation5], %s2437
        // Predicated region
        $region29: #{tpu_custom_call.1} parent=23 // pred_check
          %p2439 = pneg %p62
        $region30: #{tpu_custom_call.1} parent=23 // pred_check_branch
          %2441 = sbr.rel (%p2439) target = $region32
        $region31: #{tpu_custom_call.1} parent=23 // pred_region
          %s2442 = smul.u32 4, %s18
          %s2444 = ssub.s32 8192, 8192
          %2445 = vsyncadd %s2435, %s2444
          %s2446 = smul.addr %s2442, 16
          %s2447 = smul.addr %s2446, 128
          %s2448 = scalar_lea.hbm %s1, %s2447
          %s2449 = sshll.u32 %s2438, 4
          %s2450 = int_to_ptr.vmem [resolvable:$true] %s2449
          %2455 = dma.vmem_to_hbm [thread:$0]  %s2450, 8192, %s2448, %s2435, 128, 128, 8
        $region32: #{tpu_custom_call.1} parent=23 // pred_fallthru
          _
      $region24: #{tpu_custom_call.1} parent=5 // pred_fallthru
        _
      %p2456 = scmp.le.s32.totalorder 2, %s13
      // Predicated region
      $region33: #{tpu_custom_call.1} parent=5 // pred_check
        %p2457 = pneg %p2456
      $region34: #{tpu_custom_call.1} parent=5 // pred_check_branch
        %2459 = sbr.rel (%p2457) target = $region36
      $region35: #{tpu_custom_call.1} parent=5 // pred_region
        %s2460 = ssub.s32 %s13, 2
        // Predicated region
        $region37: #{tpu_custom_call.1} parent=35 // pred_check
          %p2461 = pneg %p68
        $region38: #{tpu_custom_call.1} parent=35 // pred_check_branch
          %2463 = sbr.rel (%p2461) target = $region40
        $region39: #{tpu_custom_call.1} parent=35 // pred_region
          %s2464 = sand.u32 %s53, 1
          %s2465 = scalar_lea.sflag [#allocation4], %s2464
          %s2466 = sand.u32 %s53, 1
          %s2467 = smul.addr %s2466, 512
          %s2468 = scalar_lea.vmem [#allocation5], %s2467
          %2469 = dma.done %s2465, 8192
        $region40: #{tpu_custom_call.1} parent=35 // pred_fallthru
          _
      $region36: #{tpu_custom_call.1} parent=5 // pred_fallthru
        _
    $region6: #{tpu_custom_call.1} parent=1 // loop_footer
      %s17 = sadd.s32 1, %s13
    $region7: #{tpu_custom_call.1} parent=1 // loop_footer_branch
      %12 = sbr.rel target = $region3
    $region8: #{tpu_custom_call.1} parent=1 // loop_exit
      _
    %2470 = vsyncpa [#allocation3], 1
    %s2471 = scalar_lea.sflag [#allocation3], 1
    %2472 = vsyncpa %s2471, 1
    %2473 = vsyncpa [#allocation4], 1
    %s2474 = scalar_lea.sflag [#allocation4], 1
    %2475 = vsyncpa %s2474, 1

</llo_original>
